<compile_context>
chip_gen: v7x
topology: tpu7x:2x2x1
jax: 0.10.0
libtpu: 0.0.40
codegen_flags: <defaults>
</compile_context>

<pallas_src>
import math
import jax
import jax.numpy as jnp
from jax.experimental import pallas as pl
from jax.experimental.pallas import tpu as pltpu

# ----------------------------- configuration --------------------------------
B      = 2    # batch_size
S_ENC  = 8    # encoder.sentence_seq_len
S_DEC  = 8    # decoder.clip_seq_len
H      = 32   # embed_size == pointernet.embed_size (hidden_size)
WSZ    = 32   # pointernet.weight_size
T      = 4    # annoed_seq_len


# ------------------------------ fused kernel --------------------------------
def make_fused_kernel(Bk, S, Hk, Wk, Tk):
    # Python-float constants only -- nothing traced may live in this closure.
    BIG = 1e30
    EPS = 1e-5          # torch LayerNorm eps
    S_f = float(S)

    def layernorm(x, g, b):
        mu = jnp.mean(x, axis=-1, keepdims=True)
        xc = x - mu
        var = jnp.mean(xc * xc, axis=-1, keepdims=True)
        return xc * jax.lax.rsqrt(var + EPS) * g + b

    def kernel(feat_ref, w_ref, out_ref):
        f32 = jnp.float32
        H4 = 4 * Hk

        # ---------------- unpack feature slab (rows, width H) ----------------
        r = 0
        tgt   = feat_ref[r:r + Bk * S, :]; r += Bk * S          # [B*S, H]
        decp  = feat_ref[r:r + S, :];      r += S               # [S, H]
        src0  = feat_ref[r:r + Bk, :];     r += Bk              # [B, H]
        encp0 = feat_ref[r:r + 1, :];      r += 1               # [1, H]
        enc_g = feat_ref[r:r + 1, :];      r += 1
        enc_b = feat_ref[r:r + 1, :];      r += 1
        dec_g = feat_ref[r:r + 1, :];      r += 1
        dec_b = feat_ref[r:r + 1, :];      r += 1

        # ---------------- unpack weight slab (cols; last row = bias|vt) ------
        wih_t = w_ref[0:Hk, 0:H4]                               # [H, 4H]
        whh_t = w_ref[0:Hk, H4:2 * H4]                          # [H, 4H]
        w1t   = w_ref[0:Hk, 2 * H4:2 * H4 + Wk]                 # [H, W]
        w2t   = w_ref[0:Hk, 2 * H4 + Wk:2 * H4 + 2 * Wk]        # [H, W]
        bias  = w_ref[Hk:Hk + 1, 0:H4]                          # [1, 4H]
        vt    = w_ref[Hk:Hk + 1, 2 * H4:2 * H4 + Wk]            # [1, W]

        # ---- encoder: only row 0 of LayerNorm(src + pos) feeds the pointer net
        # TODO(synk): dead TransformerEncoder/TransformerDecoder stacks omitted
        # (their outputs are overwritten in the reference forward).
        h_enc = layernorm(src0 + encp0, enc_g, enc_b)           # [B, H]

        # ---- decoder: trs_dec_out == LayerNorm(tgt + pos)
        dec3 = layernorm(tgt.reshape(Bk, S, Hk) + decp.reshape(1, S, Hk),
                         dec_g.reshape(1, 1, Hk), dec_b.reshape(1, 1, Hk))
        dec_flat = dec3.reshape(Bk * S, Hk)                     # [B*S, H]

        # ---- pooled LSTM init state (direct sublane reductions)
        c    = jnp.max(dec3, axis=1)                            # maxpool -> cell  [B, H]
        x_in = jnp.mean(dec3, axis=1)                           # avgpool -> input [B, H]

        # ---- loop-invariant precomputes ----
        # decoder_input never changes -> x @ W_ih^T + (b_ih + b_hh) is constant
        gx = jnp.dot(x_in, wih_t, preferred_element_type=f32) + bias       # [B, 4H]
        # blend1 = trs_dec_out @ W1^T is loop-invariant in the reference
        blend1 = jnp.dot(dec_flat, w1t,
                         preferred_element_type=f32).reshape(Bk, S, Wk)    # [B, S, W]
        # (dec @ W_hh^T)/S : lets the masked avg-pool feedback feed the gates
        # directly (no per-step Whh matmul, no explicit hidden feedback einsum)
        dec_whh = (jnp.dot(dec_flat, whh_t, preferred_element_type=f32)
                   * (1.0 / S_f)).reshape(Bk, S, H4)                       # [B, S, 4H]
        vt_b = jnp.broadcast_to(vt.reshape(1, 1, Wk), (Bk, S, Wk))         # hoisted
        g_rec = jnp.dot(h_enc, whh_t, preferred_element_type=f32)          # step-0 term [B,4H]

        lane_f  = jax.lax.broadcasted_iota(jnp.int32, (1, S), 1).astype(f32)      # [1, S]
        sub_f   = jax.lax.broadcasted_iota(jnp.int32, (1, S, 1), 1).astype(f32)   # [1, S, 1]
        pos3    = jax.lax.broadcasted_iota(jnp.int32, (Bk, S, S), 2).astype(f32)  # s index
        bg_grid = jax.lax.broadcasted_iota(jnp.int32, (Bk, S, S), 1).astype(f32)  # candidate bg
        suffix  = pos3 >= bg_grid                                                  # loop-invariant

        bg = jnp.zeros((1, 1), f32)      # bg_position: carried across batch & steps
        mask_f = None                    # previous step's mask (1.0 == masked)
        rows_out = []

        for step in range(Tk):
            # ---------- LSTMCell (gate order after packing: i, f, o | g) ----------
            gates = gx + g_rec                                             # [B, 4H]
            ifo = jax.nn.sigmoid(gates[:, 0:3 * Hk])
            g_g = jnp.tanh(gates[:, 3 * Hk:H4])
            c = ifo[:, Hk:2 * Hk] * c + ifo[:, 0:Hk] * g_g
            h_lstm = ifo[:, 2 * Hk:3 * Hk] * jnp.tanh(c)                   # [B, H]

            # ---------- attention scores: vt . tanh(W1 dec + W2 h) ----------
            blend2 = jnp.dot(h_lstm, w2t, preferred_element_type=f32)      # [B, W]
            bsum = jnp.tanh(blend1 + blend2.reshape(Bk, 1, Wk))            # [B, S, W]
            score = jnp.sum(bsum * vt_b, axis=-1) + 1e-7                   # [B, S]
            # -log_softmax over the sequence axis
            m = jnp.max(score, axis=-1, keepdims=True)
            z = score - m
            lse = jnp.log(jnp.sum(jnp.exp(z), axis=-1, keepdims=True))
            out_rows = lse - z                                             # [B, S]
            if step > 0:
                # masked_fill with the PREVIOUS step's mask, value 7.0
                out_rows = jnp.where(mask_f > 0.5, 7.0, out_rows)
            rows_out.append(out_rows)

            # ---------- batched first-argmin table (off the serial chain) ----------
            # tbl[b, g] = first index of the minimum of out_rows[b, g:]
            # NOTE: exact-f32 equality vs. the min reduce result -- keep in f32.
            vals3 = jnp.where(suffix, out_rows.reshape(Bk, 1, S), BIG)     # [B, S, S]
            minv = jnp.min(vals3, axis=-1, keepdims=True)                  # [B, S, 1]
            tbl = jnp.min(jnp.where(vals3 == minv, pos3, S_f), axis=-1)    # [B, S]

            # ---------- temporal_atten: serial bg carry over batch items ----------
            # one tiny lane-reduce (table lookup) per hop -- no argmin on the chain
            mask_rows, keep_rows = [], []
            for k in range(Bk):
                in_range = bg < S_f                                        # [1,1] bool
                tbl_k = tbl[k:k + 1, :]                                    # [1, S]
                idx = jnp.sum(jnp.where(lane_f == bg, tbl_k, 0.0),
                              axis=-1, keepdims=True)                      # [1,1] abs argmin
                mask_rows.append(jnp.where(in_range,
                                           jnp.where(lane_f < idx, 1.0, 0.0),
                                           1.0))                           # [1, S]
                keep_rows.append(jnp.where(in_range,
                                           jnp.where(sub_f >= idx, 1.0, 0.0),
                                           0.0))                           # [1, S, 1]
                # bg_position = idx_rel + 1  (RELATIVE index, as in the reference)
                bg = jnp.where(in_range, idx - bg + 1.0, bg)
            mask_f = jnp.concatenate(mask_rows, axis=0)                    # [B, S]

            # ---------- hidden feedback folded through W_hh (no matmul) ----------
            if step + 1 < Tk:
                keep3 = jnp.concatenate(keep_rows, axis=0)                 # [B, S, 1]
                g_rec = jnp.sum(keep3 * dec_whh, axis=1)                   # [B, 4H]

        # single contiguous store; wrapper reshapes to (B, T, S)
        out_ref[...] = jnp.concatenate(rows_out, axis=-1)                  # [B, T*S]

    return kernel


# ------------------------------- full model ---------------------------------
@jax.jit
def thumbnail_transformer_forward(params, src, tgt):
    B_, S_dec, H_ = tgt.shape
    W_ = params["w1"].shape[0]
    H4 = 4 * H_

    # LSTM weight packing: reorder gate rows (i,f,g,o)->(i,f,o,g), transpose so
    # features sit on lanes, fuse the two biases (tiny one-time jnp ops).
    def reorder(w):
        return jnp.concatenate([w[:2 * H_], w[3 * H_:], w[2 * H_:3 * H_]], axis=0)

    wih_t = reorder(params["w_ih"]).T                       # [H, 4H]
    whh_t = reorder(params["w_hh"]).T                       # [H, 4H]
    bias = reorder(params["b_ih"] + params["b_hh"]).reshape(1, H4)

    # ---- pack all tiny inputs into 2 VMEM slabs (2 DMAs instead of 14) ----
    feat = jnp.concatenate([
        tgt.reshape(B_ * S_dec, H_),                        # [B*S, H]
        params["dec_pos"],                                  # [S,   H]
        src[:, 0, :],                                       # [B,   H] (encoder row 0 only)
        params["enc_pos"][0:1, :],
        params["enc_gamma"].reshape(1, H_),
        params["enc_beta"].reshape(1, H_),
        params["dec_gamma"].reshape(1, H_),
        params["dec_beta"].reshape(1, H_),
    ], axis=0)                                              # [B*S+S+B+5, H]

    extra = jnp.concatenate([
        bias,                                               # [1, 4H]
        jnp.zeros((1, H4), jnp.float32),
        params["vt"].reshape(1, W_),                        # [1, W]
        jnp.zeros((1, W_), jnp.float32),
    ], axis=1)                                              # [1, 8H+2W]
    wslab = jnp.concatenate([
        jnp.concatenate([wih_t, whh_t, params["w1"].T, params["w2"].T], axis=1),
        extra,
    ], axis=0)                                              # [H+1, 8H+2W]

    kernel = make_fused_kernel(B_, S_dec, H_, W_, T)
    flat = pl.pallas_call(
        kernel,
        out_shape=jax.ShapeDtypeStruct((B_, T * S_dec), jnp.float32),
        in_specs=[pl.BlockSpec(memory_space=pltpu.MemorySpace.VMEM)] * 2,
        out_specs=pl.BlockSpec(memory_space=pltpu.MemorySpace.VMEM),
        cost_estimate=pl.CostEstimate(flops=300_000, transcendentals=5_000,
                                      bytes_accessed=64 * 1024),
    )(feat, wslab)
    return flat.reshape(B_, T, S_dec)


def init_params(key):
    ks = jax.random.split(key, 9)
    kh = 1.0 / math.sqrt(H)
    kw = 1.0 / math.sqrt(WSZ)
    u = lambda k, shape, bound: jax.random.uniform(k, shape, jnp.float32, -bound, bound)
    return dict(
        enc_pos=jax.random.normal(ks[0], (S_ENC, H), jnp.float32),
        dec_pos=jax.random.normal(ks[1], (S_DEC, H), jnp.float32),
        enc_gamma=jnp.ones((H,), jnp.float32), enc_beta=jnp.zeros((H,), jnp.float32),
        dec_gamma=jnp.ones((H,), jnp.float32), dec_beta=jnp.zeros((H,), jnp.float32),
        w_ih=u(ks[2], (4 * H, H), kh), w_hh=u(ks[3], (4 * H, H), kh),
        b_ih=u(ks[4], (4 * H,), kh), b_hh=u(ks[5], (4 * H,), kh),
        w1=u(ks[6], (WSZ, H), kh), w2=u(ks[7], (WSZ, H), kh),
        vt=u(ks[8], (1, WSZ), kw),
    )


if __name__ == "__main__":
    key = jax.random.PRNGKey(0)
    kp, ks, kt = jax.random.split(key, 3)
    params = init_params(kp)
    src = jax.random.normal(ks, (B, S_ENC, H), jnp.float32)   # sentence features
    tgt = jax.random.normal(kt, (B, S_DEC, H), jnp.float32)   # video clip features

    probs = thumbnail_transformer_forward(params, src, tgt)
    probs = jax.block_until_ready(probs)

    assert probs.shape == (B, T, S_DEC), probs.shape
    assert bool(jnp.all(jnp.isfinite(probs)))
    print("KERNEL_OK")
</pallas_src>

<mosaic_0001>
module attributes {stable_mosaic.version = 11 : i64} {
  func.func @kernel(%arg0: memref<31x32xf32, #tpu.memory_space<vmem>>, %arg1: memref<33x320xf32, #tpu.memory_space<vmem>>, %arg2: memref<2x32xf32, #tpu.memory_space<vmem>>) attributes {dimension_semantics = [], scalar_prefetch = 0 : i64, scratch_operands = 0 : i64, tpu.core_type = #tpu.core_type<tc>} {
    %c0 = arith.constant 0 : index
    %c0_0 = arith.constant 0 : index
    %0 = vector.load %arg0[%c0, %c0_0] : memref<31x32xf32, #tpu.memory_space<vmem>>, vector<16x32xf32>
    %c16 = arith.constant 16 : index
    %c0_1 = arith.constant 0 : index
    %1 = vector.load %arg0[%c16, %c0_1] : memref<31x32xf32, #tpu.memory_space<vmem>>, vector<8x32xf32>
    %c24 = arith.constant 24 : index
    %c0_2 = arith.constant 0 : index
    %2 = vector.load %arg0[%c24, %c0_2] : memref<31x32xf32, #tpu.memory_space<vmem>>, vector<2x32xf32>
    %c26 = arith.constant 26 : index
    %c0_3 = arith.constant 0 : index
    %3 = vector.load %arg0[%c26, %c0_3] : memref<31x32xf32, #tpu.memory_space<vmem>>, vector<1x32xf32>
    %c27 = arith.constant 27 : index
    %c0_4 = arith.constant 0 : index
    %4 = vector.load %arg0[%c27, %c0_4] : memref<31x32xf32, #tpu.memory_space<vmem>>, vector<1x32xf32>
    %c28 = arith.constant 28 : index
    %c0_5 = arith.constant 0 : index
    %5 = vector.load %arg0[%c28, %c0_5] : memref<31x32xf32, #tpu.memory_space<vmem>>, vector<1x32xf32>
    %c29 = arith.constant 29 : index
    %c0_6 = arith.constant 0 : index
    %6 = vector.load %arg0[%c29, %c0_6] : memref<31x32xf32, #tpu.memory_space<vmem>>, vector<1x32xf32>
    %c30 = arith.constant 30 : index
    %c0_7 = arith.constant 0 : index
    %7 = vector.load %arg0[%c30, %c0_7] : memref<31x32xf32, #tpu.memory_space<vmem>>, vector<1x32xf32>
    %c0_8 = arith.constant 0 : index
    %c0_9 = arith.constant 0 : index
    %8 = vector.load %arg1[%c0_8, %c0_9] : memref<33x320xf32, #tpu.memory_space<vmem>>, vector<32x128xf32>
    %c0_10 = arith.constant 0 : index
    %c128 = arith.constant 128 : index
    %9 = vector.load %arg1[%c0_10, %c128] : memref<33x320xf32, #tpu.memory_space<vmem>>, vector<32x128xf32>
    %c0_11 = arith.constant 0 : index
    %c256 = arith.constant 256 : index
    %10 = vector.load %arg1[%c0_11, %c256] : memref<33x320xf32, #tpu.memory_space<vmem>>, vector<32x32xf32>
    %c0_12 = arith.constant 0 : index
    %c288 = arith.constant 288 : index
    %11 = vector.load %arg1[%c0_12, %c288] : memref<33x320xf32, #tpu.memory_space<vmem>>, vector<32x32xf32>
    %c32 = arith.constant 32 : index
    %c0_13 = arith.constant 0 : index
    %12 = vector.load %arg1[%c32, %c0_13] : memref<33x320xf32, #tpu.memory_space<vmem>>, vector<1x128xf32>
    %c32_14 = arith.constant 32 : index
    %c256_15 = arith.constant 256 : index
    %13 = vector.load %arg1[%c32_14, %c256_15] : memref<33x320xf32, #tpu.memory_space<vmem>>, vector<1x32xf32>
    %14 = vector.broadcast %3 : vector<1x32xf32> to vector<2x32xf32>
    %15 = arith.addf %2, %14 : vector<2x32xf32>
    %cst = arith.constant dense<0.000000e+00> : vector<2xf32>
    %16 = vector.multi_reduction <add>, %15, %cst [1] : vector<2x32xf32> to vector<2xf32>
    %17 = vector.shape_cast %16 : vector<2xf32> to vector<2x1xf32>
    %cst_16 = arith.constant 3.200000e+01 : f32
    %18 = vector.broadcast %cst_16 : f32 to vector<2x1xf32>
    %19 = arith.divf %17, %18 : vector<2x1xf32>
    %20 = vector.broadcast %19 : vector<2x1xf32> to vector<2x32xf32>
    %21 = arith.subf %15, %20 : vector<2x32xf32>
    %22 = arith.mulf %21, %21 : vector<2x32xf32>
    %cst_17 = arith.constant dense<0.000000e+00> : vector<2xf32>
    %23 = vector.multi_reduction <add>, %22, %cst_17 [1] : vector<2x32xf32> to vector<2xf32>
    %24 = vector.shape_cast %23 : vector<2xf32> to vector<2x1xf32>
    %cst_18 = arith.constant 3.200000e+01 : f32
    %25 = vector.broadcast %cst_18 : f32 to vector<2x1xf32>
    %26 = arith.divf %24, %25 : vector<2x1xf32>
    %cst_19 = arith.constant 9.99999974E-6 : f32
    %27 = vector.broadcast %cst_19 : f32 to vector<2x1xf32>
    %28 = arith.addf %26, %27 : vector<2x1xf32>
    %29 = math.rsqrt %28 : vector<2x1xf32>
    %30 = vector.broadcast %29 : vector<2x1xf32> to vector<2x32xf32>
    %31 = arith.mulf %21, %30 : vector<2x32xf32>
    %32 = vector.broadcast %4 : vector<1x32xf32> to vector<2x32xf32>
    %33 = arith.mulf %31, %32 : vector<2x32xf32>
    %34 = vector.broadcast %5 : vector<1x32xf32> to vector<2x32xf32>
    %35 = arith.addf %33, %34 : vector<2x32xf32>
    %36 = vector.shape_cast %0 : vector<16x32xf32> to vector<2x8x32xf32>
    %37 = vector.shape_cast %1 : vector<8x32xf32> to vector<1x8x32xf32>
    %38 = vector.broadcast %37 : vector<1x8x32xf32> to vector<2x8x32xf32>
    %39 = arith.addf %36, %38 : vector<2x8x32xf32>
    %40 = vector.shape_cast %6 : vector<1x32xf32> to vector<1x1x32xf32>
    %41 = vector.shape_cast %7 : vector<1x32xf32> to vector<1x1x32xf32>
    %cst_20 = arith.constant dense<0.000000e+00> : vector<2x8xf32>
    %42 = vector.multi_reduction <add>, %39, %cst_20 [2] : vector<2x8x32xf32> to vector<2x8xf32>
    %43 = vector.shape_cast %42 : vector<2x8xf32> to vector<2x8x1xf32>
    %cst_21 = arith.constant 3.200000e+01 : f32
    %44 = vector.broadcast %cst_21 : f32 to vector<2x8x1xf32>
    %45 = arith.divf %43, %44 : vector<2x8x1xf32>
    %46 = vector.broadcast %45 : vector<2x8x1xf32> to vector<2x8x32xf32>
    %47 = arith.subf %39, %46 : vector<2x8x32xf32>
    %48 = arith.mulf %47, %47 : vector<2x8x32xf32>
    %cst_22 = arith.constant dense<0.000000e+00> : vector<2x8xf32>
    %49 = vector.multi_reduction <add>, %48, %cst_22 [2] : vector<2x8x32xf32> to vector<2x8xf32>
    %50 = vector.shape_cast %49 : vector<2x8xf32> to vector<2x8x1xf32>
    %cst_23 = arith.constant 3.200000e+01 : f32
    %51 = vector.broadcast %cst_23 : f32 to vector<2x8x1xf32>
    %52 = arith.divf %50, %51 : vector<2x8x1xf32>
    %cst_24 = arith.constant 9.99999974E-6 : f32
    %53 = vector.broadcast %cst_24 : f32 to vector<2x8x1xf32>
    %54 = arith.addf %52, %53 : vector<2x8x1xf32>
    %55 = math.rsqrt %54 : vector<2x8x1xf32>
    %56 = vector.broadcast %55 : vector<2x8x1xf32> to vector<2x8x32xf32>
    %57 = arith.mulf %47, %56 : vector<2x8x32xf32>
    %58 = vector.broadcast %40 : vector<1x1x32xf32> to vector<2x8x32xf32>
    %59 = arith.mulf %57, %58 : vector<2x8x32xf32>
    %60 = vector.broadcast %41 : vector<1x1x32xf32> to vector<2x8x32xf32>
    %61 = arith.addf %59, %60 : vector<2x8x32xf32>
    %62 = vector.shape_cast %61 : vector<2x8x32xf32> to vector<16x32xf32>
    %cst_25 = arith.constant dense<0xFF800000> : vector<2x32xf32>
    %63 = vector.multi_reduction <maximumf>, %61, %cst_25 [1] : vector<2x8x32xf32> to vector<2x32xf32>
    %cst_26 = arith.constant dense<0.000000e+00> : vector<2x32xf32>
    %64 = vector.multi_reduction <add>, %61, %cst_26 [1] : vector<2x8x32xf32> to vector<2x32xf32>
    %cst_27 = arith.constant 8.000000e+00 : f32
    %65 = vector.broadcast %cst_27 : f32 to vector<2x32xf32>
    %66 = arith.divf %64, %65 : vector<2x32xf32>
    %cst_28 = arith.constant dense<0.000000e+00> : vector<2x128xf32>
    %67 = tpu.matmul %66, %8, %cst_28 {dimension_numbers = #tpu.dot_dimension_numbers<[1], [0], [0], [1], [0, 0, 1, 1], [], []>} : vector<2x32xf32>, vector<32x128xf32>, vector<2x128xf32> -> vector<2x128xf32>
    %68 = vector.broadcast %12 : vector<1x128xf32> to vector<2x128xf32>
    %69 = arith.addf %67, %68 : vector<2x128xf32>
    %cst_29 = arith.constant dense<0.000000e+00> : vector<16x32xf32>
    %70 = tpu.matmul %62, %10, %cst_29 {dimension_numbers = #tpu.dot_dimension_numbers<[1], [0], [0], [1], [0, 0, 1, 1], [], []>} : vector<16x32xf32>, vector<32x32xf32>, vector<16x32xf32> -> vector<16x32xf32>
    %71 = vector.shape_cast %70 : vector<16x32xf32> to vector<2x8x32xf32>
    %cst_30 = arith.constant dense<0.000000e+00> : vector<16x128xf32>
    %72 = tpu.matmul %62, %9, %cst_30 {dimension_numbers = #tpu.dot_dimension_numbers<[1], [0], [0], [1], [0, 0, 1, 1], [], []>} : vector<16x32xf32>, vector<32x128xf32>, vector<16x128xf32> -> vector<16x128xf32>
    %cst_31 = arith.constant 1.250000e-01 : f32
    %73 = vector.broadcast %cst_31 : f32 to vector<16x128xf32>
    %74 = arith.mulf %72, %73 : vector<16x128xf32>
    %75 = vector.shape_cast %74 : vector<16x128xf32> to vector<2x8x128xf32>
    %76 = vector.shape_cast %13 : vector<1x32xf32> to vector<1x1x32xf32>
    %77 = vector.shape_cast %76 : vector<1x1x32xf32> to vector<1x1x32xf32>
    %78 = vector.broadcast %77 : vector<1x1x32xf32> to vector<2x8x32xf32>
    %cst_32 = arith.constant dense<0.000000e+00> : vector<2x128xf32>
    %79 = tpu.matmul %35, %9, %cst_32 {dimension_numbers = #tpu.dot_dimension_numbers<[1], [0], [0], [1], [0, 0, 1, 1], [], []>} : vector<2x32xf32>, vector<32x128xf32>, vector<2x128xf32> -> vector<2x128xf32>
    %80 = tpu.iota {dimensions = array<i32: 1>} : vector<1x8xi32>
    %81 = arith.sitofp %80 : vector<1x8xi32> to vector<1x8xf32>
    %82 = tpu.iota {dimensions = array<i32: 1>} : vector<1x8x1xi32>
    %83 = arith.sitofp %82 : vector<1x8x1xi32> to vector<1x8x1xf32>
    %84 = tpu.iota {dimensions = array<i32: 2>} : vector<2x8x8xi32>
    %85 = arith.sitofp %84 : vector<2x8x8xi32> to vector<2x8x8xf32>
    %86 = tpu.iota {dimensions = array<i32: 1>} : vector<2x8x8xi32>
    %87 = arith.sitofp %86 : vector<2x8x8xi32> to vector<2x8x8xf32>
    %88 = arith.cmpf oge, %85, %87 : vector<2x8x8xf32>
    %cst_33 = arith.constant 0.000000e+00 : f32
    %89 = vector.broadcast %cst_33 : f32 to vector<1x1xf32>
    %90 = arith.addf %69, %79 : vector<2x128xf32>
    %91 = vector.extract_strided_slice %90 {offsets = [0, 0], sizes = [2, 96], strides = [1, 1]} : vector<2x128xf32> to vector<2x96xf32>
    %92 = arith.negf %91 : vector<2x96xf32>
    %93 = math.exp %92 : vector<2x96xf32>
    %cst_34 = arith.constant 1.000000e+00 : f32
    %94 = vector.broadcast %cst_34 : f32 to vector<2x96xf32>
    %95 = arith.addf %94, %93 : vector<2x96xf32>
    %96 = arith.divf %94, %95 : vector<2x96xf32>
    %97 = vector.extract_strided_slice %90 {offsets = [0, 96], sizes = [2, 32], strides = [1, 1]} : vector<2x128xf32> to vector<2x32xf32>
    %98 = math.tanh %97 : vector<2x32xf32>
    %99 = vector.extract_strided_slice %96 {offsets = [0, 32], sizes = [2, 32], strides = [1, 1]} : vector<2x96xf32> to vector<2x32xf32>
    %100 = arith.mulf %99, %63 : vector<2x32xf32>
    %101 = vector.extract_strided_slice %96 {offsets = [0, 0], sizes = [2, 32], strides = [1, 1]} : vector<2x96xf32> to vector<2x32xf32>
    %102 = arith.mulf %101, %98 : vector<2x32xf32>
    %103 = arith.addf %100, %102 : vector<2x32xf32>
    %104 = vector.extract_strided_slice %96 {offsets = [0, 64], sizes = [2, 32], strides = [1, 1]} : vector<2x96xf32> to vector<2x32xf32>
    %105 = math.tanh %103 : vector<2x32xf32>
    %106 = arith.mulf %104, %105 : vector<2x32xf32>
    %cst_35 = arith.constant dense<0.000000e+00> : vector<2x32xf32>
    %107 = tpu.matmul %106, %11, %cst_35 {dimension_numbers = #tpu.dot_dimension_numbers<[1], [0], [0], [1], [0, 0, 1, 1], [], []>} : vector<2x32xf32>, vector<32x32xf32>, vector<2x32xf32> -> vector<2x32xf32>
    %108 = vector.shape_cast %107 : vector<2x32xf32> to vector<2x1x32xf32>
    %109 = vector.broadcast %108 : vector<2x1x32xf32> to vector<2x8x32xf32>
    %110 = arith.addf %71, %109 : vector<2x8x32xf32>
    %111 = math.tanh %110 : vector<2x8x32xf32>
    %112 = arith.mulf %111, %78 : vector<2x8x32xf32>
    %cst_36 = arith.constant dense<0.000000e+00> : vector<2x8xf32>
    %113 = vector.multi_reduction <add>, %112, %cst_36 [2] : vector<2x8x32xf32> to vector<2x8xf32>
    %cst_37 = arith.constant 1.000000e-07 : f32
    %114 = vector.broadcast %cst_37 : f32 to vector<2x8xf32>
    %115 = arith.addf %113, %114 : vector<2x8xf32>
    %cst_38 = arith.constant dense<0xFF800000> : vector<2xf32>
    %116 = vector.multi_reduction <maximumf>, %115, %cst_38 [1] : vector<2x8xf32> to vector<2xf32>
    %117 = vector.shape_cast %116 : vector<2xf32> to vector<2x1xf32>
    %118 = vector.broadcast %117 : vector<2x1xf32> to vector<2x8xf32>
    %119 = arith.subf %115, %118 : vector<2x8xf32>
    %120 = math.exp %119 : vector<2x8xf32>
    %cst_39 = arith.constant dense<0.000000e+00> : vector<2xf32>
    %121 = vector.multi_reduction <add>, %120, %cst_39 [1] : vector<2x8xf32> to vector<2xf32>
    %122 = vector.shape_cast %121 : vector<2xf32> to vector<2x1xf32>
    %123 = math.log %122 : vector<2x1xf32>
    %124 = vector.broadcast %123 : vector<2x1xf32> to vector<2x8xf32>
    %125 = arith.subf %124, %119 : vector<2x8xf32>
    %126 = vector.shape_cast %125 : vector<2x8xf32> to vector<2x1x8xf32>
    %cst_40 = arith.constant 1.000000e+30 : f32
    %127 = vector.shape_cast %126 : vector<2x1x8xf32> to vector<2x1x8xf32>
    %128 = vector.broadcast %127 : vector<2x1x8xf32> to vector<2x8x8xf32>
    %129 = vector.broadcast %cst_40 : f32 to vector<2x8x8xf32>
    %130 = arith.select %88, %128, %129 : vector<2x8x8xi1>, vector<2x8x8xf32>
    %cst_41 = arith.constant dense<0x7F800000> : vector<2x8xf32>
    %131 = vector.multi_reduction <minimumf>, %130, %cst_41 [2] : vector<2x8x8xf32> to vector<2x8xf32>
    %132 = vector.shape_cast %131 : vector<2x8xf32> to vector<2x8x1xf32>
    %133 = vector.broadcast %132 : vector<2x8x1xf32> to vector<2x8x8xf32>
    %134 = arith.cmpf oeq, %130, %133 : vector<2x8x8xf32>
    %cst_42 = arith.constant 8.000000e+00 : f32
    %135 = vector.broadcast %cst_42 : f32 to vector<2x8x8xf32>
    %136 = arith.select %134, %85, %135 : vector<2x8x8xi1>, vector<2x8x8xf32>
    %cst_43 = arith.constant dense<0x7F800000> : vector<2x8xf32>
    %137 = vector.multi_reduction <minimumf>, %136, %cst_43 [2] : vector<2x8x8xf32> to vector<2x8xf32>
    %cst_44 = arith.constant 8.000000e+00 : f32
    %138 = vector.broadcast %cst_44 : f32 to vector<1x1xf32>
    %139 = arith.cmpf olt, %89, %138 : vector<1x1xf32>
    %140 = vector.extract_strided_slice %137 {offsets = [0, 0], sizes = [1, 8], strides = [1, 1]} : vector<2x8xf32> to vector<1x8xf32>
    %141 = vector.broadcast %89 : vector<1x1xf32> to vector<1x8xf32>
    %142 = arith.cmpf oeq, %81, %141 : vector<1x8xf32>
    %cst_45 = arith.constant 0.000000e+00 : f32
    %143 = vector.broadcast %cst_45 : f32 to vector<1x8xf32>
    %144 = arith.select %142, %140, %143 : vector<1x8xi1>, vector<1x8xf32>
    %cst_46 = arith.constant dense<0.000000e+00> : vector<1xf32>
    %145 = vector.multi_reduction <add>, %144, %cst_46 [1] : vector<1x8xf32> to vector<1xf32>
    %146 = vector.shape_cast %145 : vector<1xf32> to vector<1x1xf32>
    %147 = vector.broadcast %146 : vector<1x1xf32> to vector<1x8xf32>
    %148 = arith.cmpf olt, %81, %147 : vector<1x8xf32>
    %cst_47 = arith.constant 1.000000e+00 : f32
    %cst_48 = arith.constant 0.000000e+00 : f32
    %149 = vector.broadcast %cst_47 : f32 to vector<1x8xf32>
    %150 = vector.broadcast %cst_48 : f32 to vector<1x8xf32>
    %151 = arith.select %148, %149, %150 : vector<1x8xi1>, vector<1x8xf32>
    %cst_49 = arith.constant 1.000000e+00 : f32
    %152 = vector.shape_cast %139 : vector<1x1xi1> to vector<1x1xi1>
    %153 = vector.broadcast %152 : vector<1x1xi1> to vector<1x8xi1>
    %154 = vector.broadcast %cst_49 : f32 to vector<1x8xf32>
    %155 = arith.select %153, %151, %154 : vector<1x8xi1>, vector<1x8xf32>
    %156 = vector.shape_cast %146 : vector<1x1xf32> to vector<1x1x1xf32>
    %157 = vector.broadcast %156 : vector<1x1x1xf32> to vector<1x8x1xf32>
    %158 = arith.cmpf oge, %83, %157 : vector<1x8x1xf32>
    %cst_50 = arith.constant 1.000000e+00 : f32
    %cst_51 = arith.constant 0.000000e+00 : f32
    %159 = vector.broadcast %cst_50 : f32 to vector<1x8x1xf32>
    %160 = vector.broadcast %cst_51 : f32 to vector<1x8x1xf32>
    %161 = arith.select %158, %159, %160 : vector<1x8x1xi1>, vector<1x8x1xf32>
    %cst_52 = arith.constant 0.000000e+00 : f32
    %162 = vector.shape_cast %139 : vector<1x1xi1> to vector<1x1x1xi1>
    %163 = vector.broadcast %162 : vector<1x1x1xi1> to vector<1x8x1xi1>
    %164 = vector.broadcast %cst_52 : f32 to vector<1x8x1xf32>
    %165 = arith.select %163, %161, %164 : vector<1x8x1xi1>, vector<1x8x1xf32>
    %166 = arith.subf %146, %89 : vector<1x1xf32>
    %cst_53 = arith.constant 1.000000e+00 : f32
    %167 = vector.broadcast %cst_53 : f32 to vector<1x1xf32>
    %168 = arith.addf %166, %167 : vector<1x1xf32>
    %169 = arith.select %139, %168, %89 : vector<1x1xi1>, vector<1x1xf32>
    %cst_54 = arith.constant 8.000000e+00 : f32
    %170 = vector.broadcast %cst_54 : f32 to vector<1x1xf32>
    %171 = arith.cmpf olt, %169, %170 : vector<1x1xf32>
    %172 = vector.extract_strided_slice %137 {offsets = [1, 0], sizes = [1, 8], strides = [1, 1]} : vector<2x8xf32> to vector<1x8xf32>
    %173 = vector.broadcast %169 : vector<1x1xf32> to vector<1x8xf32>
    %174 = arith.cmpf oeq, %81, %173 : vector<1x8xf32>
    %cst_55 = arith.constant 0.000000e+00 : f32
    %175 = vector.broadcast %cst_55 : f32 to vector<1x8xf32>
    %176 = arith.select %174, %172, %175 : vector<1x8xi1>, vector<1x8xf32>
    %cst_56 = arith.constant dense<0.000000e+00> : vector<1xf32>
    %177 = vector.multi_reduction <add>, %176, %cst_56 [1] : vector<1x8xf32> to vector<1xf32>
    %178 = vector.shape_cast %177 : vector<1xf32> to vector<1x1xf32>
    %179 = vector.broadcast %178 : vector<1x1xf32> to vector<1x8xf32>
    %180 = arith.cmpf olt, %81, %179 : vector<1x8xf32>
    %cst_57 = arith.constant 1.000000e+00 : f32
    %cst_58 = arith.constant 0.000000e+00 : f32
    %181 = vector.broadcast %cst_57 : f32 to vector<1x8xf32>
    %182 = vector.broadcast %cst_58 : f32 to vector<1x8xf32>
    %183 = arith.select %180, %181, %182 : vector<1x8xi1>, vector<1x8xf32>
    %cst_59 = arith.constant 1.000000e+00 : f32
    %184 = vector.shape_cast %171 : vector<1x1xi1> to vector<1x1xi1>
    %185 = vector.broadcast %184 : vector<1x1xi1> to vector<1x8xi1>
    %186 = vector.broadcast %cst_59 : f32 to vector<1x8xf32>
    %187 = arith.select %185, %183, %186 : vector<1x8xi1>, vector<1x8xf32>
    %188 = vector.shape_cast %178 : vector<1x1xf32> to vector<1x1x1xf32>
    %189 = vector.broadcast %188 : vector<1x1x1xf32> to vector<1x8x1xf32>
    %190 = arith.cmpf oge, %83, %189 : vector<1x8x1xf32>
    %cst_60 = arith.constant 1.000000e+00 : f32
    %cst_61 = arith.constant 0.000000e+00 : f32
    %191 = vector.broadcast %cst_60 : f32 to vector<1x8x1xf32>
    %192 = vector.broadcast %cst_61 : f32 to vector<1x8x1xf32>
    %193 = arith.select %190, %191, %192 : vector<1x8x1xi1>, vector<1x8x1xf32>
    %cst_62 = arith.constant 0.000000e+00 : f32
    %194 = vector.shape_cast %171 : vector<1x1xi1> to vector<1x1x1xi1>
    %195 = vector.broadcast %194 : vector<1x1x1xi1> to vector<1x8x1xi1>
    %196 = vector.broadcast %cst_62 : f32 to vector<1x8x1xf32>
    %197 = arith.select %195, %193, %196 : vector<1x8x1xi1>, vector<1x8x1xf32>
    %198 = arith.subf %178, %169 : vector<1x1xf32>
    %cst_63 = arith.constant 1.000000e+00 : f32
    %199 = vector.broadcast %cst_63 : f32 to vector<1x1xf32>
    %200 = arith.addf %198, %199 : vector<1x1xf32>
    %201 = arith.select %171, %200, %169 : vector<1x1xi1>, vector<1x1xf32>
    %202 = tpu.concatenate %155, %187 in 0 : vector<1x8xf32>, vector<1x8xf32> -> vector<2x8xf32>
    %203 = tpu.concatenate %165, %197 in 0 : vector<1x8x1xf32>, vector<1x8x1xf32> -> vector<2x8x1xf32>
    %204 = vector.broadcast %203 : vector<2x8x1xf32> to vector<2x8x128xf32>
    %205 = arith.mulf %204, %75 : vector<2x8x128xf32>
    %cst_64 = arith.constant dense<0.000000e+00> : vector<2x128xf32>
    %206 = vector.multi_reduction <add>, %205, %cst_64 [1] : vector<2x8x128xf32> to vector<2x128xf32>
    %207 = arith.addf %69, %206 : vector<2x128xf32>
    %208 = vector.extract_strided_slice %207 {offsets = [0, 0], sizes = [2, 96], strides = [1, 1]} : vector<2x128xf32> to vector<2x96xf32>
    %209 = arith.negf %208 : vector<2x96xf32>
    %210 = math.exp %209 : vector<2x96xf32>
    %cst_65 = arith.constant 1.000000e+00 : f32
    %211 = vector.broadcast %cst_65 : f32 to vector<2x96xf32>
    %212 = arith.addf %211, %210 : vector<2x96xf32>
    %213 = arith.divf %211, %212 : vector<2x96xf32>
    %214 = vector.extract_strided_slice %207 {offsets = [0, 96], sizes = [2, 32], strides = [1, 1]} : vector<2x128xf32> to vector<2x32xf32>
    %215 = math.tanh %214 : vector<2x32xf32>
    %216 = vector.extract_strided_slice %213 {offsets = [0, 32], sizes = [2, 32], strides = [1, 1]} : vector<2x96xf32> to vector<2x32xf32>
    %217 = arith.mulf %216, %103 : vector<2x32xf32>
    %218 = vector.extract_strided_slice %213 {offsets = [0, 0], sizes = [2, 32], strides = [1, 1]} : vector<2x96xf32> to vector<2x32xf32>
    %219 = arith.mulf %218, %215 : vector<2x32xf32>
    %220 = arith.addf %217, %219 : vector<2x32xf32>
    %221 = vector.extract_strided_slice %213 {offsets = [0, 64], sizes = [2, 32], strides = [1, 1]} : vector<2x96xf32> to vector<2x32xf32>
    %222 = math.tanh %220 : vector<2x32xf32>
    %223 = arith.mulf %221, %222 : vector<2x32xf32>
    %cst_66 = arith.constant dense<0.000000e+00> : vector<2x32xf32>
    %224 = tpu.matmul %223, %11, %cst_66 {dimension_numbers = #tpu.dot_dimension_numbers<[1], [0], [0], [1], [0, 0, 1, 1], [], []>} : vector<2x32xf32>, vector<32x32xf32>, vector<2x32xf32> -> vector<2x32xf32>
    %225 = vector.shape_cast %224 : vector<2x32xf32> to vector<2x1x32xf32>
    %226 = vector.broadcast %225 : vector<2x1x32xf32> to vector<2x8x32xf32>
    %227 = arith.addf %71, %226 : vector<2x8x32xf32>
    %228 = math.tanh %227 : vector<2x8x32xf32>
    %229 = arith.mulf %228, %78 : vector<2x8x32xf32>
    %cst_67 = arith.constant dense<0.000000e+00> : vector<2x8xf32>
    %230 = vector.multi_reduction <add>, %229, %cst_67 [2] : vector<2x8x32xf32> to vector<2x8xf32>
    %cst_68 = arith.constant 1.000000e-07 : f32
    %231 = vector.broadcast %cst_68 : f32 to vector<2x8xf32>
    %232 = arith.addf %230, %231 : vector<2x8xf32>
    %cst_69 = arith.constant dense<0xFF800000> : vector<2xf32>
    %233 = vector.multi_reduction <maximumf>, %232, %cst_69 [1] : vector<2x8xf32> to vector<2xf32>
    %234 = vector.shape_cast %233 : vector<2xf32> to vector<2x1xf32>
    %235 = vector.broadcast %234 : vector<2x1xf32> to vector<2x8xf32>
    %236 = arith.subf %232, %235 : vector<2x8xf32>
    %237 = math.exp %236 : vector<2x8xf32>
    %cst_70 = arith.constant dense<0.000000e+00> : vector<2xf32>
    %238 = vector.multi_reduction <add>, %237, %cst_70 [1] : vector<2x8xf32> to vector<2xf32>
    %239 = vector.shape_cast %238 : vector<2xf32> to vector<2x1xf32>
    %240 = math.log %239 : vector<2x1xf32>
    %241 = vector.broadcast %240 : vector<2x1xf32> to vector<2x8xf32>
    %242 = arith.subf %241, %236 : vector<2x8xf32>
    %cst_71 = arith.constant 5.000000e-01 : f32
    %243 = vector.broadcast %cst_71 : f32 to vector<2x8xf32>
    %244 = arith.cmpf ogt, %202, %243 : vector<2x8xf32>
    %cst_72 = arith.constant 7.000000e+00 : f32
    %245 = vector.broadcast %cst_72 : f32 to vector<2x8xf32>
    %246 = arith.select %244, %245, %242 : vector<2x8xi1>, vector<2x8xf32>
    %247 = vector.shape_cast %246 : vector<2x8xf32> to vector<2x1x8xf32>
    %cst_73 = arith.constant 1.000000e+30 : f32
    %248 = vector.shape_cast %247 : vector<2x1x8xf32> to vector<2x1x8xf32>
    %249 = vector.broadcast %248 : vector<2x1x8xf32> to vector<2x8x8xf32>
    %250 = vector.broadcast %cst_73 : f32 to vector<2x8x8xf32>
    %251 = arith.select %88, %249, %250 : vector<2x8x8xi1>, vector<2x8x8xf32>
    %cst_74 = arith.constant dense<0x7F800000> : vector<2x8xf32>
    %252 = vector.multi_reduction <minimumf>, %251, %cst_74 [2] : vector<2x8x8xf32> to vector<2x8xf32>
    %253 = vector.shape_cast %252 : vector<2x8xf32> to vector<2x8x1xf32>
    %254 = vector.broadcast %253 : vector<2x8x1xf32> to vector<2x8x8xf32>
    %255 = arith.cmpf oeq, %251, %254 : vector<2x8x8xf32>
    %cst_75 = arith.constant 8.000000e+00 : f32
    %256 = vector.broadcast %cst_75 : f32 to vector<2x8x8xf32>
    %257 = arith.select %255, %85, %256 : vector<2x8x8xi1>, vector<2x8x8xf32>
    %cst_76 = arith.constant dense<0x7F800000> : vector<2x8xf32>
    %258 = vector.multi_reduction <minimumf>, %257, %cst_76 [2] : vector<2x8x8xf32> to vector<2x8xf32>
    %cst_77 = arith.constant 8.000000e+00 : f32
    %259 = vector.broadcast %cst_77 : f32 to vector<1x1xf32>
    %260 = arith.cmpf olt, %201, %259 : vector<1x1xf32>
    %261 = vector.extract_strided_slice %258 {offsets = [0, 0], sizes = [1, 8], strides = [1, 1]} : vector<2x8xf32> to vector<1x8xf32>
    %262 = vector.broadcast %201 : vector<1x1xf32> to vector<1x8xf32>
    %263 = arith.cmpf oeq, %81, %262 : vector<1x8xf32>
    %cst_78 = arith.constant 0.000000e+00 : f32
    %264 = vector.broadcast %cst_78 : f32 to vector<1x8xf32>
    %265 = arith.select %263, %261, %264 : vector<1x8xi1>, vector<1x8xf32>
    %cst_79 = arith.constant dense<0.000000e+00> : vector<1xf32>
    %266 = vector.multi_reduction <add>, %265, %cst_79 [1] : vector<1x8xf32> to vector<1xf32>
    %267 = vector.shape_cast %266 : vector<1xf32> to vector<1x1xf32>
    %268 = vector.broadcast %267 : vector<1x1xf32> to vector<1x8xf32>
    %269 = arith.cmpf olt, %81, %268 : vector<1x8xf32>
    %cst_80 = arith.constant 1.000000e+00 : f32
    %cst_81 = arith.constant 0.000000e+00 : f32
    %270 = vector.broadcast %cst_80 : f32 to vector<1x8xf32>
    %271 = vector.broadcast %cst_81 : f32 to vector<1x8xf32>
    %272 = arith.select %269, %270, %271 : vector<1x8xi1>, vector<1x8xf32>
    %cst_82 = arith.constant 1.000000e+00 : f32
    %273 = vector.shape_cast %260 : vector<1x1xi1> to vector<1x1xi1>
    %274 = vector.broadcast %273 : vector<1x1xi1> to vector<1x8xi1>
    %275 = vector.broadcast %cst_82 : f32 to vector<1x8xf32>
    %276 = arith.select %274, %272, %275 : vector<1x8xi1>, vector<1x8xf32>
    %277 = vector.shape_cast %267 : vector<1x1xf32> to vector<1x1x1xf32>
    %278 = vector.broadcast %277 : vector<1x1x1xf32> to vector<1x8x1xf32>
    %279 = arith.cmpf oge, %83, %278 : vector<1x8x1xf32>
    %cst_83 = arith.constant 1.000000e+00 : f32
    %cst_84 = arith.constant 0.000000e+00 : f32
    %280 = vector.broadcast %cst_83 : f32 to vector<1x8x1xf32>
    %281 = vector.broadcast %cst_84 : f32 to vector<1x8x1xf32>
    %282 = arith.select %279, %280, %281 : vector<1x8x1xi1>, vector<1x8x1xf32>
    %cst_85 = arith.constant 0.000000e+00 : f32
    %283 = vector.shape_cast %260 : vector<1x1xi1> to vector<1x1x1xi1>
    %284 = vector.broadcast %283 : vector<1x1x1xi1> to vector<1x8x1xi1>
    %285 = vector.broadcast %cst_85 : f32 to vector<1x8x1xf32>
    %286 = arith.select %284, %282, %285 : vector<1x8x1xi1>, vector<1x8x1xf32>
    %287 = arith.subf %267, %201 : vector<1x1xf32>
    %cst_86 = arith.constant 1.000000e+00 : f32
    %288 = vector.broadcast %cst_86 : f32 to vector<1x1xf32>
    %289 = arith.addf %287, %288 : vector<1x1xf32>
    %290 = arith.select %260, %289, %201 : vector<1x1xi1>, vector<1x1xf32>
    %cst_87 = arith.constant 8.000000e+00 : f32
    %291 = vector.broadcast %cst_87 : f32 to vector<1x1xf32>
    %292 = arith.cmpf olt, %290, %291 : vector<1x1xf32>
    %293 = vector.extract_strided_slice %258 {offsets = [1, 0], sizes = [1, 8], strides = [1, 1]} : vector<2x8xf32> to vector<1x8xf32>
    %294 = vector.broadcast %290 : vector<1x1xf32> to vector<1x8xf32>
    %295 = arith.cmpf oeq, %81, %294 : vector<1x8xf32>
    %cst_88 = arith.constant 0.000000e+00 : f32
    %296 = vector.broadcast %cst_88 : f32 to vector<1x8xf32>
    %297 = arith.select %295, %293, %296 : vector<1x8xi1>, vector<1x8xf32>
    %cst_89 = arith.constant dense<0.000000e+00> : vector<1xf32>
    %298 = vector.multi_reduction <add>, %297, %cst_89 [1] : vector<1x8xf32> to vector<1xf32>
    %299 = vector.shape_cast %298 : vector<1xf32> to vector<1x1xf32>
    %300 = vector.broadcast %299 : vector<1x1xf32> to vector<1x8xf32>
    %301 = arith.cmpf olt, %81, %300 : vector<1x8xf32>
    %cst_90 = arith.constant 1.000000e+00 : f32
    %cst_91 = arith.constant 0.000000e+00 : f32
    %302 = vector.broadcast %cst_90 : f32 to vector<1x8xf32>
    %303 = vector.broadcast %cst_91 : f32 to vector<1x8xf32>
    %304 = arith.select %301, %302, %303 : vector<1x8xi1>, vector<1x8xf32>
    %cst_92 = arith.constant 1.000000e+00 : f32
    %305 = vector.shape_cast %292 : vector<1x1xi1> to vector<1x1xi1>
    %306 = vector.broadcast %305 : vector<1x1xi1> to vector<1x8xi1>
    %307 = vector.broadcast %cst_92 : f32 to vector<1x8xf32>
    %308 = arith.select %306, %304, %307 : vector<1x8xi1>, vector<1x8xf32>
    %309 = vector.shape_cast %299 : vector<1x1xf32> to vector<1x1x1xf32>
    %310 = vector.broadcast %309 : vector<1x1x1xf32> to vector<1x8x1xf32>
    %311 = arith.cmpf oge, %83, %310 : vector<1x8x1xf32>
    %cst_93 = arith.constant 1.000000e+00 : f32
    %cst_94 = arith.constant 0.000000e+00 : f32
    %312 = vector.broadcast %cst_93 : f32 to vector<1x8x1xf32>
    %313 = vector.broadcast %cst_94 : f32 to vector<1x8x1xf32>
    %314 = arith.select %311, %312, %313 : vector<1x8x1xi1>, vector<1x8x1xf32>
    %cst_95 = arith.constant 0.000000e+00 : f32
    %315 = vector.shape_cast %292 : vector<1x1xi1> to vector<1x1x1xi1>
    %316 = vector.broadcast %315 : vector<1x1x1xi1> to vector<1x8x1xi1>
    %317 = vector.broadcast %cst_95 : f32 to vector<1x8x1xf32>
    %318 = arith.select %316, %314, %317 : vector<1x8x1xi1>, vector<1x8x1xf32>
    %319 = arith.subf %299, %290 : vector<1x1xf32>
    %cst_96 = arith.constant 1.000000e+00 : f32
    %320 = vector.broadcast %cst_96 : f32 to vector<1x1xf32>
    %321 = arith.addf %319, %320 : vector<1x1xf32>
    %322 = arith.select %292, %321, %290 : vector<1x1xi1>, vector<1x1xf32>
    %323 = tpu.concatenate %276, %308 in 0 : vector<1x8xf32>, vector<1x8xf32> -> vector<2x8xf32>
    %324 = tpu.concatenate %286, %318 in 0 : vector<1x8x1xf32>, vector<1x8x1xf32> -> vector<2x8x1xf32>
    %325 = vector.broadcast %324 : vector<2x8x1xf32> to vector<2x8x128xf32>
    %326 = arith.mulf %325, %75 : vector<2x8x128xf32>
    %cst_97 = arith.constant dense<0.000000e+00> : vector<2x128xf32>
    %327 = vector.multi_reduction <add>, %326, %cst_97 [1] : vector<2x8x128xf32> to vector<2x128xf32>
    %328 = arith.addf %69, %327 : vector<2x128xf32>
    %329 = vector.extract_strided_slice %328 {offsets = [0, 0], sizes = [2, 96], strides = [1, 1]} : vector<2x128xf32> to vector<2x96xf32>
    %330 = arith.negf %329 : vector<2x96xf32>
    %331 = math.exp %330 : vector<2x96xf32>
    %cst_98 = arith.constant 1.000000e+00 : f32
    %332 = vector.broadcast %cst_98 : f32 to vector<2x96xf32>
    %333 = arith.addf %332, %331 : vector<2x96xf32>
    %334 = arith.divf %332, %333 : vector<2x96xf32>
    %335 = vector.extract_strided_slice %328 {offsets = [0, 96], sizes = [2, 32], strides = [1, 1]} : vector<2x128xf32> to vector<2x32xf32>
    %336 = math.tanh %335 : vector<2x32xf32>
    %337 = vector.extract_strided_slice %334 {offsets = [0, 32], sizes = [2, 32], strides = [1, 1]} : vector<2x96xf32> to vector<2x32xf32>
    %338 = arith.mulf %337, %220 : vector<2x32xf32>
    %339 = vector.extract_strided_slice %334 {offsets = [0, 0], sizes = [2, 32], strides = [1, 1]} : vector<2x96xf32> to vector<2x32xf32>
    %340 = arith.mulf %339, %336 : vector<2x32xf32>
    %341 = arith.addf %338, %340 : vector<2x32xf32>
    %342 = vector.extract_strided_slice %334 {offsets = [0, 64], sizes = [2, 32], strides = [1, 1]} : vector<2x96xf32> to vector<2x32xf32>
    %343 = math.tanh %341 : vector<2x32xf32>
    %344 = arith.mulf %342, %343 : vector<2x32xf32>
    %cst_99 = arith.constant dense<0.000000e+00> : vector<2x32xf32>
    %345 = tpu.matmul %344, %11, %cst_99 {dimension_numbers = #tpu.dot_dimension_numbers<[1], [0], [0], [1], [0, 0, 1, 1], [], []>} : vector<2x32xf32>, vector<32x32xf32>, vector<2x32xf32> -> vector<2x32xf32>
    %346 = vector.shape_cast %345 : vector<2x32xf32> to vector<2x1x32xf32>
    %347 = vector.broadcast %346 : vector<2x1x32xf32> to vector<2x8x32xf32>
    %348 = arith.addf %71, %347 : vector<2x8x32xf32>
    %349 = math.tanh %348 : vector<2x8x32xf32>
    %350 = arith.mulf %349, %78 : vector<2x8x32xf32>
    %cst_100 = arith.constant dense<0.000000e+00> : vector<2x8xf32>
    %351 = vector.multi_reduction <add>, %350, %cst_100 [2] : vector<2x8x32xf32> to vector<2x8xf32>
    %cst_101 = arith.constant 1.000000e-07 : f32
    %352 = vector.broadcast %cst_101 : f32 to vector<2x8xf32>
    %353 = arith.addf %351, %352 : vector<2x8xf32>
    %cst_102 = arith.constant dense<0xFF800000> : vector<2xf32>
    %354 = vector.multi_reduction <maximumf>, %353, %cst_102 [1] : vector<2x8xf32> to vector<2xf32>
    %355 = vector.shape_cast %354 : vector<2xf32> to vector<2x1xf32>
    %356 = vector.broadcast %355 : vector<2x1xf32> to vector<2x8xf32>
    %357 = arith.subf %353, %356 : vector<2x8xf32>
    %358 = math.exp %357 : vector<2x8xf32>
    %cst_103 = arith.constant dense<0.000000e+00> : vector<2xf32>
    %359 = vector.multi_reduction <add>, %358, %cst_103 [1] : vector<2x8xf32> to vector<2xf32>
    %360 = vector.shape_cast %359 : vector<2xf32> to vector<2x1xf32>
    %361 = math.log %360 : vector<2x1xf32>
    %362 = vector.broadcast %361 : vector<2x1xf32> to vector<2x8xf32>
    %363 = arith.subf %362, %357 : vector<2x8xf32>
    %cst_104 = arith.constant 5.000000e-01 : f32
    %364 = vector.broadcast %cst_104 : f32 to vector<2x8xf32>
    %365 = arith.cmpf ogt, %323, %364 : vector<2x8xf32>
    %cst_105 = arith.constant 7.000000e+00 : f32
    %366 = vector.broadcast %cst_105 : f32 to vector<2x8xf32>
    %367 = arith.select %365, %366, %363 : vector<2x8xi1>, vector<2x8xf32>
    %368 = vector.shape_cast %367 : vector<2x8xf32> to vector<2x1x8xf32>
    %cst_106 = arith.constant 1.000000e+30 : f32
    %369 = vector.shape_cast %368 : vector<2x1x8xf32> to vector<2x1x8xf32>
    %370 = vector.broadcast %369 : vector<2x1x8xf32> to vector<2x8x8xf32>
    %371 = vector.broadcast %cst_106 : f32 to vector<2x8x8xf32>
    %372 = arith.select %88, %370, %371 : vector<2x8x8xi1>, vector<2x8x8xf32>
    %cst_107 = arith.constant dense<0x7F800000> : vector<2x8xf32>
    %373 = vector.multi_reduction <minimumf>, %372, %cst_107 [2] : vector<2x8x8xf32> to vector<2x8xf32>
    %374 = vector.shape_cast %373 : vector<2x8xf32> to vector<2x8x1xf32>
    %375 = vector.broadcast %374 : vector<2x8x1xf32> to vector<2x8x8xf32>
    %376 = arith.cmpf oeq, %372, %375 : vector<2x8x8xf32>
    %cst_108 = arith.constant 8.000000e+00 : f32
    %377 = vector.broadcast %cst_108 : f32 to vector<2x8x8xf32>
    %378 = arith.select %376, %85, %377 : vector<2x8x8xi1>, vector<2x8x8xf32>
    %cst_109 = arith.constant dense<0x7F800000> : vector<2x8xf32>
    %379 = vector.multi_reduction <minimumf>, %378, %cst_109 [2] : vector<2x8x8xf32> to vector<2x8xf32>
    %cst_110 = arith.constant 8.000000e+00 : f32
    %380 = vector.broadcast %cst_110 : f32 to vector<1x1xf32>
    %381 = arith.cmpf olt, %322, %380 : vector<1x1xf32>
    %382 = vector.extract_strided_slice %379 {offsets = [0, 0], sizes = [1, 8], strides = [1, 1]} : vector<2x8xf32> to vector<1x8xf32>
    %383 = vector.broadcast %322 : vector<1x1xf32> to vector<1x8xf32>
    %384 = arith.cmpf oeq, %81, %383 : vector<1x8xf32>
    %cst_111 = arith.constant 0.000000e+00 : f32
    %385 = vector.broadcast %cst_111 : f32 to vector<1x8xf32>
    %386 = arith.select %384, %382, %385 : vector<1x8xi1>, vector<1x8xf32>
    %cst_112 = arith.constant dense<0.000000e+00> : vector<1xf32>
    %387 = vector.multi_reduction <add>, %386, %cst_112 [1] : vector<1x8xf32> to vector<1xf32>
    %388 = vector.shape_cast %387 : vector<1xf32> to vector<1x1xf32>
    %389 = vector.broadcast %388 : vector<1x1xf32> to vector<1x8xf32>
    %390 = arith.cmpf olt, %81, %389 : vector<1x8xf32>
    %cst_113 = arith.constant 1.000000e+00 : f32
    %cst_114 = arith.constant 0.000000e+00 : f32
    %391 = vector.broadcast %cst_113 : f32 to vector<1x8xf32>
    %392 = vector.broadcast %cst_114 : f32 to vector<1x8xf32>
    %393 = arith.select %390, %391, %392 : vector<1x8xi1>, vector<1x8xf32>
    %cst_115 = arith.constant 1.000000e+00 : f32
    %394 = vector.shape_cast %381 : vector<1x1xi1> to vector<1x1xi1>
    %395 = vector.broadcast %394 : vector<1x1xi1> to vector<1x8xi1>
    %396 = vector.broadcast %cst_115 : f32 to vector<1x8xf32>
    %397 = arith.select %395, %393, %396 : vector<1x8xi1>, vector<1x8xf32>
    %398 = vector.shape_cast %388 : vector<1x1xf32> to vector<1x1x1xf32>
    %399 = vector.broadcast %398 : vector<1x1x1xf32> to vector<1x8x1xf32>
    %400 = arith.cmpf oge, %83, %399 : vector<1x8x1xf32>
    %cst_116 = arith.constant 1.000000e+00 : f32
    %cst_117 = arith.constant 0.000000e+00 : f32
    %401 = vector.broadcast %cst_116 : f32 to vector<1x8x1xf32>
    %402 = vector.broadcast %cst_117 : f32 to vector<1x8x1xf32>
    %403 = arith.select %400, %401, %402 : vector<1x8x1xi1>, vector<1x8x1xf32>
    %cst_118 = arith.constant 0.000000e+00 : f32
    %404 = vector.shape_cast %381 : vector<1x1xi1> to vector<1x1x1xi1>
    %405 = vector.broadcast %404 : vector<1x1x1xi1> to vector<1x8x1xi1>
    %406 = vector.broadcast %cst_118 : f32 to vector<1x8x1xf32>
    %407 = arith.select %405, %403, %406 : vector<1x8x1xi1>, vector<1x8x1xf32>
    %408 = arith.subf %388, %322 : vector<1x1xf32>
    %cst_119 = arith.constant 1.000000e+00 : f32
    %409 = vector.broadcast %cst_119 : f32 to vector<1x1xf32>
    %410 = arith.addf %408, %409 : vector<1x1xf32>
    %411 = arith.select %381, %410, %322 : vector<1x1xi1>, vector<1x1xf32>
    %cst_120 = arith.constant 8.000000e+00 : f32
    %412 = vector.broadcast %cst_120 : f32 to vector<1x1xf32>
    %413 = arith.cmpf olt, %411, %412 : vector<1x1xf32>
    %414 = vector.extract_strided_slice %379 {offsets = [1, 0], sizes = [1, 8], strides = [1, 1]} : vector<2x8xf32> to vector<1x8xf32>
    %415 = vector.broadcast %411 : vector<1x1xf32> to vector<1x8xf32>
    %416 = arith.cmpf oeq, %81, %415 : vector<1x8xf32>
    %cst_121 = arith.constant 0.000000e+00 : f32
    %417 = vector.broadcast %cst_121 : f32 to vector<1x8xf32>
    %418 = arith.select %416, %414, %417 : vector<1x8xi1>, vector<1x8xf32>
    %cst_122 = arith.constant dense<0.000000e+00> : vector<1xf32>
    %419 = vector.multi_reduction <add>, %418, %cst_122 [1] : vector<1x8xf32> to vector<1xf32>
    %420 = vector.shape_cast %419 : vector<1xf32> to vector<1x1xf32>
    %421 = vector.broadcast %420 : vector<1x1xf32> to vector<1x8xf32>
    %422 = arith.cmpf olt, %81, %421 : vector<1x8xf32>
    %cst_123 = arith.constant 1.000000e+00 : f32
    %cst_124 = arith.constant 0.000000e+00 : f32
    %423 = vector.broadcast %cst_123 : f32 to vector<1x8xf32>
    %424 = vector.broadcast %cst_124 : f32 to vector<1x8xf32>
    %425 = arith.select %422, %423, %424 : vector<1x8xi1>, vector<1x8xf32>
    %cst_125 = arith.constant 1.000000e+00 : f32
    %426 = vector.shape_cast %413 : vector<1x1xi1> to vector<1x1xi1>
    %427 = vector.broadcast %426 : vector<1x1xi1> to vector<1x8xi1>
    %428 = vector.broadcast %cst_125 : f32 to vector<1x8xf32>
    %429 = arith.select %427, %425, %428 : vector<1x8xi1>, vector<1x8xf32>
    %430 = vector.shape_cast %420 : vector<1x1xf32> to vector<1x1x1xf32>
    %431 = vector.broadcast %430 : vector<1x1x1xf32> to vector<1x8x1xf32>
    %432 = arith.cmpf oge, %83, %431 : vector<1x8x1xf32>
    %cst_126 = arith.constant 1.000000e+00 : f32
    %cst_127 = arith.constant 0.000000e+00 : f32
    %433 = vector.broadcast %cst_126 : f32 to vector<1x8x1xf32>
    %434 = vector.broadcast %cst_127 : f32 to vector<1x8x1xf32>
    %435 = arith.select %432, %433, %434 : vector<1x8x1xi1>, vector<1x8x1xf32>
    %cst_128 = arith.constant 0.000000e+00 : f32
    %436 = vector.shape_cast %413 : vector<1x1xi1> to vector<1x1x1xi1>
    %437 = vector.broadcast %436 : vector<1x1x1xi1> to vector<1x8x1xi1>
    %438 = vector.broadcast %cst_128 : f32 to vector<1x8x1xf32>
    %439 = arith.select %437, %435, %438 : vector<1x8x1xi1>, vector<1x8x1xf32>
    %440 = tpu.concatenate %397, %429 in 0 : vector<1x8xf32>, vector<1x8xf32> -> vector<2x8xf32>
    %441 = tpu.concatenate %407, %439 in 0 : vector<1x8x1xf32>, vector<1x8x1xf32> -> vector<2x8x1xf32>
    %442 = vector.broadcast %441 : vector<2x8x1xf32> to vector<2x8x128xf32>
    %443 = arith.mulf %442, %75 : vector<2x8x128xf32>
    %cst_129 = arith.constant dense<0.000000e+00> : vector<2x128xf32>
    %444 = vector.multi_reduction <add>, %443, %cst_129 [1] : vector<2x8x128xf32> to vector<2x128xf32>
    %445 = arith.addf %69, %444 : vector<2x128xf32>
    %446 = vector.extract_strided_slice %445 {offsets = [0, 0], sizes = [2, 96], strides = [1, 1]} : vector<2x128xf32> to vector<2x96xf32>
    %447 = arith.negf %446 : vector<2x96xf32>
    %448 = math.exp %447 : vector<2x96xf32>
    %cst_130 = arith.constant 1.000000e+00 : f32
    %449 = vector.broadcast %cst_130 : f32 to vector<2x96xf32>
    %450 = arith.addf %449, %448 : vector<2x96xf32>
    %451 = arith.divf %449, %450 : vector<2x96xf32>
    %452 = vector.extract_strided_slice %445 {offsets = [0, 96], sizes = [2, 32], strides = [1, 1]} : vector<2x128xf32> to vector<2x32xf32>
    %453 = math.tanh %452 : vector<2x32xf32>
    %454 = vector.extract_strided_slice %451 {offsets = [0, 32], sizes = [2, 32], strides = [1, 1]} : vector<2x96xf32> to vector<2x32xf32>
    %455 = arith.mulf %454, %341 : vector<2x32xf32>
    %456 = vector.extract_strided_slice %451 {offsets = [0, 0], sizes = [2, 32], strides = [1, 1]} : vector<2x96xf32> to vector<2x32xf32>
    %457 = arith.mulf %456, %453 : vector<2x32xf32>
    %458 = arith.addf %455, %457 : vector<2x32xf32>
    %459 = vector.extract_strided_slice %451 {offsets = [0, 64], sizes = [2, 32], strides = [1, 1]} : vector<2x96xf32> to vector<2x32xf32>
    %460 = math.tanh %458 : vector<2x32xf32>
    %461 = arith.mulf %459, %460 : vector<2x32xf32>
    %cst_131 = arith.constant dense<0.000000e+00> : vector<2x32xf32>
    %462 = tpu.matmul %461, %11, %cst_131 {dimension_numbers = #tpu.dot_dimension_numbers<[1], [0], [0], [1], [0, 0, 1, 1], [], []>} : vector<2x32xf32>, vector<32x32xf32>, vector<2x32xf32> -> vector<2x32xf32>
    %463 = vector.shape_cast %462 : vector<2x32xf32> to vector<2x1x32xf32>
    %464 = vector.broadcast %463 : vector<2x1x32xf32> to vector<2x8x32xf32>
    %465 = arith.addf %71, %464 : vector<2x8x32xf32>
    %466 = math.tanh %465 : vector<2x8x32xf32>
    %467 = arith.mulf %466, %78 : vector<2x8x32xf32>
    %cst_132 = arith.constant dense<0.000000e+00> : vector<2x8xf32>
    %468 = vector.multi_reduction <add>, %467, %cst_132 [2] : vector<2x8x32xf32> to vector<2x8xf32>
    %cst_133 = arith.constant 1.000000e-07 : f32
    %469 = vector.broadcast %cst_133 : f32 to vector<2x8xf32>
    %470 = arith.addf %468, %469 : vector<2x8xf32>
    %cst_134 = arith.constant dense<0xFF800000> : vector<2xf32>
    %471 = vector.multi_reduction <maximumf>, %470, %cst_134 [1] : vector<2x8xf32> to vector<2xf32>
    %472 = vector.shape_cast %471 : vector<2xf32> to vector<2x1xf32>
    %473 = vector.broadcast %472 : vector<2x1xf32> to vector<2x8xf32>
    %474 = arith.subf %470, %473 : vector<2x8xf32>
    %475 = math.exp %474 : vector<2x8xf32>
    %cst_135 = arith.constant dense<0.000000e+00> : vector<2xf32>
    %476 = vector.multi_reduction <add>, %475, %cst_135 [1] : vector<2x8xf32> to vector<2xf32>
    %477 = vector.shape_cast %476 : vector<2xf32> to vector<2x1xf32>
    %478 = math.log %477 : vector<2x1xf32>
    %479 = vector.broadcast %478 : vector<2x1xf32> to vector<2x8xf32>
    %480 = arith.subf %479, %474 : vector<2x8xf32>
    %cst_136 = arith.constant 5.000000e-01 : f32
    %481 = vector.broadcast %cst_136 : f32 to vector<2x8xf32>
    %482 = arith.cmpf ogt, %440, %481 : vector<2x8xf32>
    %cst_137 = arith.constant 7.000000e+00 : f32
    %483 = vector.broadcast %cst_137 : f32 to vector<2x8xf32>
    %484 = arith.select %482, %483, %480 : vector<2x8xi1>, vector<2x8xf32>
    %485 = tpu.concatenate %125, %246, %367, %484 in 1 : vector<2x8xf32>, vector<2x8xf32>, vector<2x8xf32>, vector<2x8xf32> -> vector<2x32xf32>
    %c0_138 = arith.constant 0 : index
    %c0_139 = arith.constant 0 : index
    %486 = vector.load %arg2[%c0_138, %c0_139] : memref<2x32xf32, #tpu.memory_space<vmem>>, vector<2x32xf32>
    tpu.vector_store %arg2[%c0_138, %c0_139], %485 {strides = array<i32>} : memref<2x32xf32, #tpu.memory_space<vmem>>, vector<2x32xf32>,
    return
  }
}

</mosaic_0001>

<llo_original>
// kernel: thumbnail_transformer_forward.1
$region0: #{thumbnail_transformer_forward.1}
  #allocation0 [shape = 'u32[]', space=smem, size = 0x4, offset = 0x4, fixed_abs, tag = 'smem constant byte address 0x4 - core index']
  #allocation1 [shape = 'u32[144,128]{1,0:T(1,128)}', space=vmem, size = 0x12000, scoped, tag = 'internal scratch']
  %s0 = inlined_call_operand.vmem [shape: f32[31,32], index: 0, kind: input, shape index: {}]
  %s1 = inlined_call_operand.vmem [shape: f32[33,320], index: 1, kind: input, shape index: {}]
  %s2 = inlined_call_operand.vmem [shape: f32[2,32], index: 2, kind: output, shape index: {}]
  %s3 = sld [smem:[#allocation0]]
  $region18: #{thumbnail_transformer_forward.1} parent=0
    _
  %s5 = ssub.s32 1, %s3
  %s6 = scalar_select 0, %s5, %s3
  // Predicated region
  $region2: #{thumbnail_transformer_forward.1} parent=0 // pred_check
    _
  $region3: #{thumbnail_transformer_forward.1} parent=0 // pred_check_branch
    %8 = sbr.rel (0) target = $region5
  $region4: #{thumbnail_transformer_forward.1} parent=0 // pred_region
    _
  $region5: #{thumbnail_transformer_forward.1} parent=0 // pred_fallthru
    _
  // Predicated region
  $region6: #{thumbnail_transformer_forward.1} parent=0 // pred_check
    _
  $region7: #{thumbnail_transformer_forward.1} parent=0 // pred_check_branch
    %10 = sbr.rel (0) target = $region9
  $region8: #{thumbnail_transformer_forward.1} parent=0 // pred_region
    _
  $region9: #{thumbnail_transformer_forward.1} parent=0 // pred_fallthru
    _
  %v11 = vld [vmem:[%s0] sm:$0xff]
  %v12 = vld [vmem:[%s0 + $0x8] sm:$0xff]
  %v13 = vld [vmem:[%s0 + $0x10] sm:$0xff]
  %v14 = vld [vmem:[%s0 + $0x18] sm:$0x3]
  %v15 = vld [vmem:[%s0 + $0x1a] sm:$0x1]
  %v16 = vld [vmem:[%s0 + $0x1b] sm:$0x1]
  %v17 = vld [vmem:[%s0 + $0x1c] sm:$0x1]
  %v18 = vld [vmem:[%s0 + $0x1d] sm:$0x1]
  %v19 = vld [vmem:[%s0 + $0x1e] sm:$0x1]
  %v20 = vld [vmem:[%s1] sm:$0xff]
  %v21 = vld [vmem:[%s1 + $0x18] sm:$0xff]
  %v22 = vld [vmem:[%s1 + $0x30] sm:$0xff]
  %v23 = vld [vmem:[%s1 + $0x48] sm:$0xff]
  %v24 = vld [vmem:[%s1 + $0x8] sm:$0xff]
  %v25 = vld [vmem:[%s1 + $0x20] sm:$0xff]
  %v26 = vld [vmem:[%s1 + $0x38] sm:$0xff]
  %v27 = vld [vmem:[%s1 + $0x50] sm:$0xff]
  %v28 = vld [vmem:[%s1 + $0x10] sm:$0xff]
  %v29 = vld [vmem:[%s1 + $0x28] sm:$0xff]
  %v30 = vld [vmem:[%s1 + $0x40] sm:$0xff]
  %v31 = vld [vmem:[%s1 + $0x58] sm:$0xff]
  %v32 = vld [vmem:[%s1 + $0x60] ss:$0 sm:$0xff]
  %v33 = vld [vmem:[%s1 + $0x70] ss:$0 sm:$0xff]
  %v34 = vlaneseq
  %v35 = vshrl.u32 %v34, 7
  %v36 = vsub.s32 0, %v35
  %v37 = vrot.slane %v15, %v36
  %v38 = vadd.f32 %v14, %v37
  %vm39 = vcmask 254976
  %v40 = vsel %vm39, %v38, 0.0
  %41 = vadd.xlane.f32.xlu0 %v40
  %v42 = vpop.xlane.xlu0 %41
  %v43 = vrcp.pop 32.0
  %v44 = vmul.f32 %v42, %v43
  %v45 = vsub.f32 %v38, %v44
  %v46 = vmul.f32 %v45, %v45
  %v47 = vsel %vm39, %v46, 0.0
  %48 = vadd.xlane.f32.xlu0 %v47
  %v49 = vpop.xlane.xlu0 %48
  %v50 = vmul.f32 %v49, %v43
  %v51 = vadd.f32 %v50, 1e-05
  %v52 = vrsqrt.pop %v51
  %v53 = vmul.f32 %v45, %v52
  %v54 = vlaneseq
  %v55 = vshrl.u32 %v54, 7
  %v56 = vsub.s32 0, %v55
  %v57 = vrot.slane %v16, %v56
  %v58 = vmul.f32 %v53, %v57
  %v59 = vlaneseq
  %v60 = vshrl.u32 %v59, 7
  %v61 = vsub.s32 0, %v60
  %v62 = vrot.slane %v17, %v61
  %v63 = vadd.f32 %v58, %v62
  %v64 = vadd.f32 %v11, %v13
  %v65 = vadd.f32 %v12, %v13
  %vm66 = vcmask 261120
  %v67 = vsel %vm66, %v64, 0.0
  %68 = vadd.xlane.f32.xlu0 %v67
  %v69 = vpop.xlane.xlu0 %68
  %v70 = vsel %vm66, %v65, 0.0
  %71 = vadd.xlane.f32.xlu0 %v70
  %v72 = vpop.xlane.xlu0 %71
  %v73 = vmul.f32 %v69, %v43
  %v74 = vmul.f32 %v72, %v43
  %v75 = vsub.f32 %v64, %v73
  %v76 = vsub.f32 %v65, %v74
  %v77 = vmul.f32 %v75, %v75
  %v78 = vmul.f32 %v76, %v76
  %v79 = vsel %vm66, %v77, 0.0
  %80 = vadd.xlane.f32.xlu0 %v79
  %v81 = vpop.xlane.xlu0 %80
  %v82 = vsel %vm66, %v78, 0.0
  %83 = vadd.xlane.f32.xlu0 %v82
  %v84 = vpop.xlane.xlu0 %83
  %v85 = vmul.f32 %v81, %v43
  %v86 = vmul.f32 %v84, %v43
  %v87 = vadd.f32 %v85, 1e-05
  %v88 = vadd.f32 %v86, 1e-05
  %v89 = vrsqrt.pop %v87
  %v90 = vrsqrt.pop %v88
  %v91 = vmul.f32 %v75, %v89
  %v92 = vmul.f32 %v76, %v90
  %v93 = vlaneseq
  %v94 = vshrl.u32 %v93, 7
  %v95 = vsub.s32 0, %v94
  %v96 = vrot.slane %v18, %v95
  %v97 = vmul.f32 %v91, %v96
  %v98 = vmul.f32 %v92, %v96
  %v99 = vlaneseq
  %v100 = vshrl.u32 %v99, 7
  %v101 = vsub.s32 0, %v100
  %v102 = vrot.slane %v19, %v101
  %v103 = vadd.f32 %v97, %v102
  %v104 = vadd.f32 %v98, %v102
  %v105 = vsel %vm66, %v103, -inf
  %v106 = vrot.slane %v105, 4
  %v107 = vmax.f32 %v105, %v106
  %v108 = vrot.slane %v107, 2
  %v109 = vmax.f32 %v107, %v108
  %v110 = vrot.slane %v109, 1
  %v111 = vmax.f32 %v109, %v110
  %v112 = vsel %vm66, %v104, -inf
  %v113 = vrot.slane %v112, 4
  %v114 = vmax.f32 %v112, %v113
  %v115 = vrot.slane %v114, 2
  %v116 = vmax.f32 %v114, %v115
  %v117 = vrot.slane %v116, 1
  %v118 = vmax.f32 %v116, %v117
  %v119 = vsel %vm66, %v103, 0.0
  %v120 = vrot.slane %v119, 4
  %v121 = vadd.f32 %v119, %v120
  %v122 = vrot.slane %v121, 2
  %v123 = vadd.f32 %v121, %v122
  %v124 = vrot.slane %v123, 1
  %v125 = vadd.f32 %v123, %v124
  %v126 = vsel %vm66, %v104, 0.0
  %v127 = vrot.slane %v126, 4
  %v128 = vadd.f32 %v126, %v127
  %v129 = vrot.slane %v128, 2
  %v130 = vadd.f32 %v128, %v129
  %v131 = vrot.slane %v130, 1
  %v132 = vadd.f32 %v130, %v131
  %v133 = vrcp.pop 8.0
  %v134 = vmul.f32 %v125, %v133
  %v135 = vmul.f32 %v132, %v133
  %vm138 = vcmask 1041409
  %v139 = vsel %vm138, %v135, %v134
  %v140 = vsel %vm66, %v139, 0
  %142 = vmatprep.subr.mxu0 0.0
  %143 = vmatpush1.msra.mxu0 %v20
  %144 = vmatprep.subr.mxu0 0.0
  %145 = vmatpush1.msra.mxu0 %v21
  %146 = vmatprep.subr.mxu0 0.0
  %147 = vmatpush1.msra.mxu0 %v22
  %148 = vmatprep.subr.mxu0 0.0
  %149 = vmatpush1.msra.mxu0 %v23
  %150 = vmatprep.subr.mxu0 0.0
  %151 = vmatpush1.msra.mxu0 0.0
  %152 = vmatprep.subr.mxu0 0.0
  %153 = vmatpush1.msra.mxu0 0.0
  %154 = vmatprep.subr.mxu0 0.0
  %155 = vmatpush1.msra.mxu0 0.0
  %156 = vmatprep.subr.mxu0 0.0
  %157 = vmatpush1.msra.mxu0 0.0
  %158 = vmatprep.subr.mxu0 0.0
  %159 = vmatpush1.msra.mxu0 0.0
  %160 = vmatprep.subr.mxu0 0.0
  %161 = vmatpush1.msra.mxu0 0.0
  %162 = vmatprep.subr.mxu0 0.0
  %163 = vmatpush1.msra.mxu0 0.0
  %164 = vmatprep.subr.mxu0 0.0
  %165 = vmatpush1.msra.mxu0 0.0
  %166 = vmatprep.subr.mxu0 0.0
  %167 = vmatpush1.msra.mxu0 0.0
  %168 = vmatprep.subr.mxu0 0.0
  %169 = vmatpush1.msra.mxu0 0.0
  %170 = vmatprep.subr.mxu0 0.0
  %171 = vmatpush1.msra.mxu0 0.0
  %172 = vmatprep.subr.mxu0 0.0
  %173 = vmatpush1.msra.mxu0 0.0
  %174 = vmatprep.subr.mxu0 0.0
  %175 = vmatpush1.msra.mxu0 0.0
  %176 = vmatprep.subr.mxu0 0.0
  %177 = vmatpush1.msra.mxu0 0.0
  %178 = vmatprep.subr.mxu0 0.0
  %179 = vmatpush1.msra.mxu0 0.0
  %180 = vmatprep.subr.mxu0 0.0
  %181 = vmatpush1.msra.mxu0 0.0
  %182 = vmatprep.subr.mxu0 0.0
  %183 = vmatpush1.msra.mxu0 0.0
  %184 = vmatprep.subr.mxu0 0.0
  %185 = vmatpush1.msra.mxu0 0.0
  %186 = vmatprep.subr.mxu0 0.0
  %187 = vmatpush1.msra.mxu0 0.0
  %188 = vmatprep.subr.mxu0 0.0
  %189 = vmatpush1.msra.mxu0 0.0
  %190 = vmatprep.subr.mxu0 0.0
  %191 = vmatpush1.msra.mxu0 0.0
  %192 = vmatprep.subr.mxu0 0.0
  %193 = vmatpush1.msra.mxu0 0.0
  %194 = vmatprep.subr.mxu0 0.0
  %195 = vmatpush1.msra.mxu0 0.0
  %196 = vmatprep.subr.mxu0 0.0
  %197 = vmatpush1.msra.mxu0 0.0
  %198 = vmatprep.subr.mxu0 0.0
  %199 = vmatpush1.msra.mxu0 0.0
  %200 = vmatprep.subr.mxu0 0.0
  %201 = vmatpush1.msra.mxu0 0.0
  %202 = vmatprep.subr.mxu0 0.0
  %203 = vmatpush1.msra.mxu0 0.0
  %204 = vmatprep.subr.mxu0 0.0
  %205 = vmatpush1.msra.mxu0 0.0
  %206 = vmatprep.mubr.f32.mxu0 0.0
  %207 = vmatmul.mubr.f32.gmra.mrb[0].mxu0 %v140
  %v208 = vpop.f32.mrb[0].mxu0
  %v209 = vadd.f32 %v32, %v208
  %v210 = vpop.f32.mrb[0].mxu0
  %211 = vdwg.mxu0
  %v213 = vsel %vm66, %v103, 0
  %v216 = vsel %vm66, %v104, 0
  %218 = vmatprep.subr.mxu0 0.0
  %219 = vmatpush1.msra.mxu0 %v28
  %220 = vmatprep.subr.mxu0 0.0
  %221 = vmatpush1.msra.mxu0 %v29
  %222 = vmatprep.subr.mxu0 0.0
  %223 = vmatpush1.msra.mxu0 %v30
  %224 = vmatprep.subr.mxu0 0.0
  %225 = vmatpush1.msra.mxu0 %v31
  %226 = vmatprep.subr.mxu0 0.0
  %227 = vmatpush1.msra.mxu0 0.0
  %228 = vmatprep.subr.mxu0 0.0
  %229 = vmatpush1.msra.mxu0 0.0
  %230 = vmatprep.subr.mxu0 0.0
  %231 = vmatpush1.msra.mxu0 0.0
  %232 = vmatprep.subr.mxu0 0.0
  %233 = vmatpush1.msra.mxu0 0.0
  %234 = vmatprep.subr.mxu0 0.0
  %235 = vmatpush1.msra.mxu0 0.0
  %236 = vmatprep.subr.mxu0 0.0
  %237 = vmatpush1.msra.mxu0 0.0
  %238 = vmatprep.subr.mxu0 0.0
  %239 = vmatpush1.msra.mxu0 0.0
  %240 = vmatprep.subr.mxu0 0.0
  %241 = vmatpush1.msra.mxu0 0.0
  %242 = vmatprep.subr.mxu0 0.0
  %243 = vmatpush1.msra.mxu0 0.0
  %244 = vmatprep.subr.mxu0 0.0
  %245 = vmatpush1.msra.mxu0 0.0
  %246 = vmatprep.subr.mxu0 0.0
  %247 = vmatpush1.msra.mxu0 0.0
  %248 = vmatprep.subr.mxu0 0.0
  %249 = vmatpush1.msra.mxu0 0.0
  %250 = vmatprep.subr.mxu0 0.0
  %251 = vmatpush1.msra.mxu0 0.0
  %252 = vmatprep.subr.mxu0 0.0
  %253 = vmatpush1.msra.mxu0 0.0
  %254 = vmatprep.subr.mxu0 0.0
  %255 = vmatpush1.msra.mxu0 0.0
  %256 = vmatprep.subr.mxu0 0.0
  %257 = vmatpush1.msra.mxu0 0.0
  %258 = vmatprep.subr.mxu0 0.0
  %259 = vmatpush1.msra.mxu0 0.0
  %260 = vmatprep.subr.mxu0 0.0
  %261 = vmatpush1.msra.mxu0 0.0
  %262 = vmatprep.subr.mxu0 0.0
  %263 = vmatpush1.msra.mxu0 0.0
  %264 = vmatprep.subr.mxu0 0.0
  %265 = vmatpush1.msra.mxu0 0.0
  %266 = vmatprep.subr.mxu0 0.0
  %267 = vmatpush1.msra.mxu0 0.0
  %268 = vmatprep.subr.mxu0 0.0
  %269 = vmatpush1.msra.mxu0 0.0
  %270 = vmatprep.subr.mxu0 0.0
  %271 = vmatpush1.msra.mxu0 0.0
  %272 = vmatprep.subr.mxu0 0.0
  %273 = vmatpush1.msra.mxu0 0.0
  %274 = vmatprep.subr.mxu0 0.0
  %275 = vmatpush1.msra.mxu0 0.0
  %276 = vmatprep.subr.mxu0 0.0
  %277 = vmatpush1.msra.mxu0 0.0
  %278 = vmatprep.subr.mxu0 0.0
  %279 = vmatpush1.msra.mxu0 0.0
  %280 = vmatprep.subr.mxu0 0.0
  %281 = vmatpush1.msra.mxu0 0.0
  %282 = vmatprep.mubr.f32.mxu0 0.0
  %283 = vmatmul.mubr.f32.gmra.mrb[0].mxu0 %v213
  %v284 = vpop.f32.mrb[0].mxu0
  %v285 = vadd.f32 0.0, %v284
  %v286 = vpop.f32.mrb[0].mxu0
  %287 = vmatprep.mubr.f32.mxu0 0.0
  %288 = vmatmul.mubr.f32.gmra.mrb[0].mxu0 %v216
  %v289 = vpop.f32.mrb[0].mxu0
  %v290 = vadd.f32 0.0, %v289
  %v291 = vpop.f32.mrb[0].mxu0
  %292 = vdwg.mxu0
  %293 = vmatprep.subr.mxu0 0.0
  %294 = vmatpush1.msra.mxu0 %v24
  %295 = vmatprep.subr.mxu0 0.0
  %296 = vmatpush1.msra.mxu0 %v25
  %297 = vmatprep.subr.mxu0 0.0
  %298 = vmatpush1.msra.mxu0 %v26
  %299 = vmatprep.subr.mxu0 0.0
  %300 = vmatpush1.msra.mxu0 %v27
  %301 = vmatprep.subr.mxu0 0.0
  %302 = vmatpush1.msra.mxu0 0.0
  %303 = vmatprep.subr.mxu0 0.0
  %304 = vmatpush1.msra.mxu0 0.0
  %305 = vmatprep.subr.mxu0 0.0
  %306 = vmatpush1.msra.mxu0 0.0
  %307 = vmatprep.subr.mxu0 0.0
  %308 = vmatpush1.msra.mxu0 0.0
  %309 = vmatprep.subr.mxu0 0.0
  %310 = vmatpush1.msra.mxu0 0.0
  %311 = vmatprep.subr.mxu0 0.0
  %312 = vmatpush1.msra.mxu0 0.0
  %313 = vmatprep.subr.mxu0 0.0
  %314 = vmatpush1.msra.mxu0 0.0
  %315 = vmatprep.subr.mxu0 0.0
  %316 = vmatpush1.msra.mxu0 0.0
  %317 = vmatprep.subr.mxu0 0.0
  %318 = vmatpush1.msra.mxu0 0.0
  %319 = vmatprep.subr.mxu0 0.0
  %320 = vmatpush1.msra.mxu0 0.0
  %321 = vmatprep.subr.mxu0 0.0
  %322 = vmatpush1.msra.mxu0 0.0
  %323 = vmatprep.subr.mxu0 0.0
  %324 = vmatpush1.msra.mxu0 0.0
  %325 = vmatprep.subr.mxu0 0.0
  %326 = vmatpush1.msra.mxu0 0.0
  %327 = vmatprep.subr.mxu0 0.0
  %328 = vmatpush1.msra.mxu0 0.0
  %329 = vmatprep.subr.mxu0 0.0
  %330 = vmatpush1.msra.mxu0 0.0
  %331 = vmatprep.subr.mxu0 0.0
  %332 = vmatpush1.msra.mxu0 0.0
  %333 = vmatprep.subr.mxu0 0.0
  %334 = vmatpush1.msra.mxu0 0.0
  %335 = vmatprep.subr.mxu0 0.0
  %336 = vmatpush1.msra.mxu0 0.0
  %337 = vmatprep.subr.mxu0 0.0
  %338 = vmatpush1.msra.mxu0 0.0
  %339 = vmatprep.subr.mxu0 0.0
  %340 = vmatpush1.msra.mxu0 0.0
  %341 = vmatprep.subr.mxu0 0.0
  %342 = vmatpush1.msra.mxu0 0.0
  %343 = vmatprep.subr.mxu0 0.0
  %344 = vmatpush1.msra.mxu0 0.0
  %345 = vmatprep.subr.mxu0 0.0
  %346 = vmatpush1.msra.mxu0 0.0
  %347 = vmatprep.subr.mxu0 0.0
  %348 = vmatpush1.msra.mxu0 0.0
  %349 = vmatprep.subr.mxu0 0.0
  %350 = vmatpush1.msra.mxu0 0.0
  %351 = vmatprep.subr.mxu0 0.0
  %352 = vmatpush1.msra.mxu0 0.0
  %353 = vmatprep.subr.mxu0 0.0
  %354 = vmatpush1.msra.mxu0 0.0
  %355 = vmatprep.subr.mxu0 0.0
  %356 = vmatpush1.msra.mxu0 0.0
  %357 = vmatprep.mubr.f32.mxu0 0.0
  %358 = vmatmul.mubr.f32.gmra.mrb[0].mxu0 %v213
  %v359 = vpop.f32.mrb[0].mxu0
  %v360 = vadd.f32 0.0, %v359
  %v361 = vpop.f32.mrb[0].mxu0
  %362 = vmatprep.mubr.f32.mxu0 0.0
  %363 = vmatmul.mubr.f32.gmra.mrb[0].mxu0 %v216
  %v364 = vpop.f32.mrb[0].mxu0
  %v365 = vadd.f32 0.0, %v364
  %v366 = vpop.f32.mrb[0].mxu0
  %367 = vdwg.mxu0
  %v368 = vmul.f32 %v360, 0.125
  %v369 = vmul.f32 %v365, 0.125
  %v371 = vsel %vm66, %v63, 0
  %373 = vmatprep.subr.mxu0 0.0
  %374 = vmatpush1.msra.mxu0 %v24
  %375 = vmatprep.subr.mxu0 0.0
  %376 = vmatpush1.msra.mxu0 %v25
  %377 = vmatprep.subr.mxu0 0.0
  %378 = vmatpush1.msra.mxu0 %v26
  %379 = vmatprep.subr.mxu0 0.0
  %380 = vmatpush1.msra.mxu0 %v27
  %381 = vmatprep.subr.mxu0 0.0
  %382 = vmatpush1.msra.mxu0 0.0
  %383 = vmatprep.subr.mxu0 0.0
  %384 = vmatpush1.msra.mxu0 0.0
  %385 = vmatprep.subr.mxu0 0.0
  %386 = vmatpush1.msra.mxu0 0.0
  %387 = vmatprep.subr.mxu0 0.0
  %388 = vmatpush1.msra.mxu0 0.0
  %389 = vmatprep.subr.mxu0 0.0
  %390 = vmatpush1.msra.mxu0 0.0
  %391 = vmatprep.subr.mxu0 0.0
  %392 = vmatpush1.msra.mxu0 0.0
  %393 = vmatprep.subr.mxu0 0.0
  %394 = vmatpush1.msra.mxu0 0.0
  %395 = vmatprep.subr.mxu0 0.0
  %396 = vmatpush1.msra.mxu0 0.0
  %397 = vmatprep.subr.mxu0 0.0
  %398 = vmatpush1.msra.mxu0 0.0
  %399 = vmatprep.subr.mxu0 0.0
  %400 = vmatpush1.msra.mxu0 0.0
  %401 = vmatprep.subr.mxu0 0.0
  %402 = vmatpush1.msra.mxu0 0.0
  %403 = vmatprep.subr.mxu0 0.0
  %404 = vmatpush1.msra.mxu0 0.0
  %405 = vmatprep.subr.mxu0 0.0
  %406 = vmatpush1.msra.mxu0 0.0
  %407 = vmatprep.subr.mxu0 0.0
  %408 = vmatpush1.msra.mxu0 0.0
  %409 = vmatprep.subr.mxu0 0.0
  %410 = vmatpush1.msra.mxu0 0.0
  %411 = vmatprep.subr.mxu0 0.0
  %412 = vmatpush1.msra.mxu0 0.0
  %413 = vmatprep.subr.mxu0 0.0
  %414 = vmatpush1.msra.mxu0 0.0
  %415 = vmatprep.subr.mxu0 0.0
  %416 = vmatpush1.msra.mxu0 0.0
  %417 = vmatprep.subr.mxu0 0.0
  %418 = vmatpush1.msra.mxu0 0.0
  %419 = vmatprep.subr.mxu0 0.0
  %420 = vmatpush1.msra.mxu0 0.0
  %421 = vmatprep.subr.mxu0 0.0
  %422 = vmatpush1.msra.mxu0 0.0
  %423 = vmatprep.subr.mxu0 0.0
  %424 = vmatpush1.msra.mxu0 0.0
  %425 = vmatprep.subr.mxu0 0.0
  %426 = vmatpush1.msra.mxu0 0.0
  %427 = vmatprep.subr.mxu0 0.0
  %428 = vmatpush1.msra.mxu0 0.0
  %429 = vmatprep.subr.mxu0 0.0
  %430 = vmatpush1.msra.mxu0 0.0
  %431 = vmatprep.subr.mxu0 0.0
  %432 = vmatpush1.msra.mxu0 0.0
  %433 = vmatprep.subr.mxu0 0.0
  %434 = vmatpush1.msra.mxu0 0.0
  %435 = vmatprep.subr.mxu0 0.0
  %436 = vmatpush1.msra.mxu0 0.0
  %437 = vmatprep.mubr.f32.mxu0 0.0
  %438 = vmatmul.mubr.f32.gmra.mrb[0].mxu0 %v371
  %v439 = vpop.f32.mrb[0].mxu0
  %v440 = vadd.f32 0.0, %v439
  %v441 = vpop.f32.mrb[0].mxu0
  %442 = vdwg.mxu0
  %v443 = vlaneseq
  %v444 = vand.u32 %v443, 127
  %v445 = vcvt.s32.f32 %v444
  %v446 = vlaneseq
  %v447 = vshrl.u32 %v446, 7
  %v448 = vcvt.s32.f32 %v447
  %vm449 = vcmp.ge.f32.partialorder %v445, %v448
  %v450 = vadd.f32 %v209, %v440
  %v451 = vxor.u32 %v450, 2147483648
  %v452 = vmul.f32 %v451, 1.442695
  %v453 = vpow.pop %v452
  %v454 = vadd.f32 %v453, 1.0
  %v455 = vrcp.pop %v454
  %v456 = vmul.f32 1.0, %v455
  %v457 = vtanh.pop %v450
  %v460 = vsel %vm138, %v118, %v111
  %461 = vrot.lane.b32.xlu0 %v460, 32
  %v462 = vpop.permute.xlu0 %461
  %v464 = vmul.f32 %v456, %v462
  %466 = vrot.lane.b32.xlu0 %v457, 32
  %v467 = vpop.permute.xlu0 %466
  %v469 = vmul.f32 %v456, %v467
  %471 = vrot.lane.b32.xlu0 %v469, 32
  %v472 = vpop.permute.xlu0 %471
  %v474 = vadd.f32 %v464, %v472
  %v475 = vtanh.pop %v474
  %477 = vrot.lane.b32.xlu0 %v475, 32
  %v478 = vpop.permute.xlu0 %477
  %v480 = vmul.f32 %v456, %v478
  %482 = vrot.lane.b32.xlu0 %v480, 64
  %v483 = vpop.permute.xlu0 %482
  %488 = vrot.lane.b32.xlu0 %v28, 96
  %v489 = vpop.permute.xlu0 %488
  %490 = vrot.lane.b32.xlu0 %v29, 96
  %v491 = vpop.permute.xlu0 %490
  %492 = vrot.lane.b32.xlu0 %v30, 96
  %v493 = vpop.permute.xlu0 %492
  %494 = vrot.lane.b32.xlu0 %v31, 96
  %v495 = vpop.permute.xlu0 %494
  %v500 = vsel %vm66, %v483, 0
  %502 = vmatprep.subr.mxu0 0.0
  %503 = vmatpush1.msra.mxu0 %v489
  %504 = vmatprep.subr.mxu0 0.0
  %505 = vmatpush1.msra.mxu0 %v491
  %506 = vmatprep.subr.mxu0 0.0
  %507 = vmatpush1.msra.mxu0 %v493
  %508 = vmatprep.subr.mxu0 0.0
  %509 = vmatpush1.msra.mxu0 %v495
  %510 = vmatprep.subr.mxu0 0.0
  %511 = vmatpush1.msra.mxu0 0.0
  %512 = vmatprep.subr.mxu0 0.0
  %513 = vmatpush1.msra.mxu0 0.0
  %514 = vmatprep.subr.mxu0 0.0
  %515 = vmatpush1.msra.mxu0 0.0
  %516 = vmatprep.subr.mxu0 0.0
  %517 = vmatpush1.msra.mxu0 0.0
  %518 = vmatprep.subr.mxu0 0.0
  %519 = vmatpush1.msra.mxu0 0.0
  %520 = vmatprep.subr.mxu0 0.0
  %521 = vmatpush1.msra.mxu0 0.0
  %522 = vmatprep.subr.mxu0 0.0
  %523 = vmatpush1.msra.mxu0 0.0
  %524 = vmatprep.subr.mxu0 0.0
  %525 = vmatpush1.msra.mxu0 0.0
  %526 = vmatprep.subr.mxu0 0.0
  %527 = vmatpush1.msra.mxu0 0.0
  %528 = vmatprep.subr.mxu0 0.0
  %529 = vmatpush1.msra.mxu0 0.0
  %530 = vmatprep.subr.mxu0 0.0
  %531 = vmatpush1.msra.mxu0 0.0
  %532 = vmatprep.subr.mxu0 0.0
  %533 = vmatpush1.msra.mxu0 0.0
  %534 = vmatprep.subr.mxu0 0.0
  %535 = vmatpush1.msra.mxu0 0.0
  %536 = vmatprep.subr.mxu0 0.0
  %537 = vmatpush1.msra.mxu0 0.0
  %538 = vmatprep.subr.mxu0 0.0
  %539 = vmatpush1.msra.mxu0 0.0
  %540 = vmatprep.subr.mxu0 0.0
  %541 = vmatpush1.msra.mxu0 0.0
  %542 = vmatprep.subr.mxu0 0.0
  %543 = vmatpush1.msra.mxu0 0.0
  %544 = vmatprep.subr.mxu0 0.0
  %545 = vmatpush1.msra.mxu0 0.0
  %546 = vmatprep.subr.mxu0 0.0
  %547 = vmatpush1.msra.mxu0 0.0
  %548 = vmatprep.subr.mxu0 0.0
  %549 = vmatpush1.msra.mxu0 0.0
  %550 = vmatprep.subr.mxu0 0.0
  %551 = vmatpush1.msra.mxu0 0.0
  %552 = vmatprep.subr.mxu0 0.0
  %553 = vmatpush1.msra.mxu0 0.0
  %554 = vmatprep.subr.mxu0 0.0
  %555 = vmatpush1.msra.mxu0 0.0
  %556 = vmatprep.subr.mxu0 0.0
  %557 = vmatpush1.msra.mxu0 0.0
  %558 = vmatprep.subr.mxu0 0.0
  %559 = vmatpush1.msra.mxu0 0.0
  %560 = vmatprep.subr.mxu0 0.0
  %561 = vmatpush1.msra.mxu0 0.0
  %562 = vmatprep.subr.mxu0 0.0
  %563 = vmatpush1.msra.mxu0 0.0
  %564 = vmatprep.subr.mxu0 0.0
  %565 = vmatpush1.msra.mxu0 0.0
  %566 = vmatprep.mubr.f32.mxu0 0.0
  %567 = vmatmul.mubr.f32.gmra.mrb[0].mxu0 %v500
  %v568 = vpop.f32.mrb[0].mxu0
  %v569 = vadd.f32 0.0, %v568
  %v570 = vpop.f32.mrb[0].mxu0
  %571 = vdwg.mxu0
  %v574 = vunpack.c.l.s4 1966171168
  %v575 = vunpack.c.0.s8 %v574
  %v576 = vlaneseq
  %v577 = vshrl.u32 %v576, 7
  %v578 = vsub.s32 %v575, %v577
  %v579 = vrot.slane %v569, %v578
  %v580 = vcombine.high %v579, %v579
  %v582 = vunpack.c.l.s4 1966171168
  %v583 = vunpack.c.0.s8 %v582
  %v584 = vlaneseq
  %v585 = vshrl.u32 %v584, 7
  %v586 = vsub.s32 %v583, %v585
  %v587 = vrot.slane %v579, %v586
  %v589 = vunpack.c.l.s4 1966171168
  %v590 = vunpack.c.0.s8 %v589
  %v591 = vlaneseq
  %v592 = vshrl.u32 %v591, 7
  %v593 = vsub.s32 %v590, %v592
  %v594 = vrot.slane %v580, %v593
  %v595 = vlaneseq
  %v596 = vshrl.u32 %v595, 7
  %v597 = vsub.s32 0, %v596
  %v598 = vrot.slane %v587, %v597
  %v599 = vlaneseq
  %v600 = vshrl.u32 %v599, 7
  %v601 = vsub.s32 0, %v600
  %v602 = vrot.slane %v594, %v601
  %v605 = vadd.f32 %v285, %v598
  %v606 = vadd.f32 %v290, %v602
  %v607 = vtanh.pop %v605
  %v608 = vtanh.pop %v606
  %v609 = vmul.f32 %v607, %v33
  %v610 = vmul.f32 %v608, %v33
  %v611 = vsel %vm66, %v609, 0.0
  %612 = vadd.xlane.f32.xlu0 %v611
  %v613 = vpop.xlane.xlu0 %612
  %v614 = vsel %vm66, %v610, 0.0
  %615 = vadd.xlane.f32.xlu0 %v614
  %v616 = vpop.xlane.xlu0 %615
  %v617 = vadd.f32 %v613, 1e-07
  %v618 = vadd.f32 %v616, 1e-07
  %v621 = vlaneseq
  %v622 = vshrl.u32 %v621, 7
  %v623 = vsub.s32 %v444, %v622
  %v624 = vrot.slane %v617, %v623
  %v625 = vlaneseq
  %v626 = vshrl.u32 %v625, 7
  %v627 = vsub.s32 %v444, %v626
  %v628 = vrot.slane %v618, %v627
  %v629 = vsel %vm138, %v628, %v624
  %vm631 = vcmask 58368
  %v632 = vsel %vm631, %v629, -inf
  %633 = vmax.xlane.f32.xlu0 %v632
  %v634 = vpop.xlane.xlu0 %633
  %v636 = vlaneseq
  %v637 = vshrl.u32 %v636, 7
  %v638 = vsub.s32 0, %v637
  %v639 = vrot.slane %v634, %v638
  %v640 = vlaneseq
  %v641 = vshrl.u32 %v640, 7
  %v642 = vsub.s32 1, %v641
  %v643 = vrot.slane %v634, %v642
  %v646 = vsub.f32 %v617, %v639
  %v647 = vsub.f32 %v618, %v643
  %v648 = vmul.f32 %v646, 1.442695
  %v649 = vpow.pop %v648
  %v650 = vmul.f32 %v647, 1.442695
  %v651 = vpow.pop %v650
  %654 = vset.pattern.permute.xlu0 0
  %655 = vperm.xlu0 %654, %v649
  %v656 = vpop.permute.xlu0 %655
  %657 = vset.pattern.permute.xlu0 0
  %658 = vperm.xlu0 %657, %v651
  %v659 = vpop.permute.xlu0 %658
  %v660 = vlaneseq
  %v661 = vshrl.u32 %v660, 7
  %v662 = vsub.s32 %v444, %v661
  %v663 = vrot.slane %v656, %v662
  %v664 = vlaneseq
  %v665 = vshrl.u32 %v664, 7
  %v666 = vsub.s32 %v444, %v665
  %v667 = vrot.slane %v659, %v666
  %v668 = vsel %vm138, %v667, %v663
  %v670 = vsel %vm631, %v668, 0.0
  %671 = vadd.xlane.f32.xlu0 %v670
  %v672 = vpop.xlane.xlu0 %671
  %v673 = vlog2.pop %v672
  %v674 = vmul.f32 %v673, 0.6931472
  %677 = vset.pattern.permute.xlu0 0
  %678 = vperm.xlu0 %677, %v646
  %v679 = vpop.permute.xlu0 %678
  %680 = vset.pattern.permute.xlu0 0
  %681 = vperm.xlu0 %680, %v647
  %v682 = vpop.permute.xlu0 %681
  %v683 = vlaneseq
  %v684 = vshrl.u32 %v683, 7
  %v685 = vsub.s32 %v444, %v684
  %v686 = vrot.slane %v679, %v685
  %v687 = vlaneseq
  %v688 = vshrl.u32 %v687, 7
  %v689 = vsub.s32 %v444, %v688
  %v690 = vrot.slane %v682, %v689
  %v691 = vsel %vm138, %v690, %v686
  %v693 = vsub.f32 %v674, %v691
  %v696 = vunpack.c.l.s4 1966171168
  %v697 = vunpack.c.0.s8 %v696
  %v698 = vlaneseq
  %v699 = vshrl.u32 %v698, 7
  %v700 = vsub.s32 %v697, %v699
  %v701 = vrot.slane %v693, %v700
  %v702 = vcombine.high %v701, %v701
  %v704 = vunpack.c.l.s4 1966171168
  %v705 = vunpack.c.0.s8 %v704
  %v706 = vlaneseq
  %v707 = vshrl.u32 %v706, 7
  %v708 = vsub.s32 %v705, %v707
  %v709 = vrot.slane %v701, %v708
  %v711 = vunpack.c.l.s4 1966171168
  %v712 = vunpack.c.0.s8 %v711
  %v713 = vlaneseq
  %v714 = vshrl.u32 %v713, 7
  %v715 = vsub.s32 %v712, %v714
  %v716 = vrot.slane %v702, %v715
  %v717 = vlaneseq
  %v718 = vshrl.u32 %v717, 7
  %v719 = vsub.s32 0, %v718
  %v720 = vrot.slane %v709, %v719
  %v721 = vlaneseq
  %v722 = vshrl.u32 %v721, 7
  %v723 = vsub.s32 0, %v722
  %v724 = vrot.slane %v716, %v723
  %v727 = vsel %vm449, %v720, 1e+30
  %v728 = vsel %vm449, %v724, 1e+30
  %vm729 = vcmask 64512
  %v730 = vsel %vm729, %v727, inf
  %731 = vmin.xlane.f32.xlu0 %v730
  %v732 = vpop.xlane.xlu0 %731
  %v733 = vsel %vm729, %v728, inf
  %734 = vmin.xlane.f32.xlu0 %v733
  %v735 = vpop.xlane.xlu0 %734
  %vm736 = vcmp.eq.f32.partialorder %v727, %v732
  %vm737 = vcmp.eq.f32.partialorder %v728, %v735
  %v738 = vsel %vm736, %v445, 8.0
  %v739 = vsel %vm737, %v445, 8.0
  %v740 = vsel %vm729, %v738, inf
  %741 = vmin.xlane.f32.xlu0 %v740
  %v742 = vpop.xlane.xlu0 %741
  %v743 = vsel %vm729, %v739, inf
  %744 = vmin.xlane.f32.xlu0 %v743
  %v745 = vpop.xlane.xlu0 %744
  %vm746 = vcmp.lt.f32.partialorder 0.0, 8.0
  %vm747 = vcmp.eq.f32.partialorder %v445, 0.0
  %v749 = vlaneseq
  %v750 = vshrl.u32 %v749, 7
  %v751 = vsub.s32 %v444, %v750
  %v752 = vrot.slane %v742, %v751
  %v754 = vsel %vm747, %v752, 0.0
  %vm755 = vcmask 57344
  %v756 = vsel %vm755, %v754, 0.0
  %757 = vadd.xlane.f32.xlu0 %v756
  %v758 = vpop.xlane.xlu0 %757
  %vm759 = vcmp.lt.f32.partialorder %v445, %v758
  %v760 = vsel %vm759, 1.0, 0.0
  %v761 = vsel %vm746, 1, 0
  %vm762 = vcmp.eq.s32.totalorder %v761, 1
  %v763 = vsel %vm762, %v760, 1.0
  %v764 = vlaneseq
  %v765 = vshrl.u32 %v764, 7
  %v766 = vsub.s32 0, %v765
  %v767 = vrot.slane %v758, %v766
  %vm768 = vcmp.ge.f32.partialorder %v448, %v767
  %v769 = vsel %vm768, 1.0, 0.0
  %v770 = vsel %vm762, %v769, 0.0
  %v771 = vadd.f32 %v758, 1.0
  %v772 = vsel %vm746, %v771, 0.0
  %vm773 = vcmp.lt.f32.partialorder %v772, 8.0
  %vm774 = vcmp.eq.f32.partialorder %v445, %v772
  %v776 = vlaneseq
  %v777 = vshrl.u32 %v776, 7
  %v778 = vsub.s32 %v444, %v777
  %v779 = vrot.slane %v745, %v778
  %v781 = vsel %vm774, %v779, 0.0
  %v782 = vsel %vm755, %v781, 0.0
  %783 = vadd.xlane.f32.xlu0 %v782
  %v784 = vpop.xlane.xlu0 %783
  %vm785 = vcmp.lt.f32.partialorder %v445, %v784
  %v786 = vsel %vm785, 1.0, 0.0
  %v787 = vsel %vm773, 1, 0
  %vm788 = vcmp.eq.s32.totalorder %v787, 1
  %v789 = vsel %vm788, %v786, 1.0
  %v790 = vlaneseq
  %v791 = vshrl.u32 %v790, 7
  %v792 = vsub.s32 0, %v791
  %v793 = vrot.slane %v784, %v792
  %vm794 = vcmp.ge.f32.partialorder %v448, %v793
  %v795 = vsel %vm794, 1.0, 0.0
  %v796 = vlaneseq
  %v797 = vshrl.u32 %v796, 7
  %v798 = vsub.s32 0, %v797
  %v799 = vrot.slane %v787, %v798
  %vm800 = vcmp.eq.s32.totalorder %v799, 1
  %v801 = vsel %vm800, %v795, 0.0
  %v802 = vsub.f32 %v784, %v772
  %v803 = vadd.f32 %v802, 1.0
  %v804 = vsel %vm773, %v803, %v772
  %v806 = vrot.slane %v789, 7
  %vm808 = vcmask 1040384
  %v809 = vsel %vm808, %v763, %v806
  %811 = vset.pattern.permute.xlu0 0
  %812 = vperm.xlu0 %811, %v770
  %v813 = vpop.permute.xlu0 %812
  %816 = vset.pattern.permute.xlu0 0
  %817 = vperm.xlu0 %816, %v801
  %v818 = vpop.permute.xlu0 %817
  %v820 = vmul.f32 %v813, %v368
  %v821 = vmul.f32 %v818, %v369
  %v822 = vrot.slane %v820, 4
  %v823 = vadd.f32 %v820, %v822
  %v824 = vrot.slane %v823, 2
  %v825 = vadd.f32 %v823, %v824
  %v826 = vrot.slane %v825, 1
  %v827 = vadd.f32 %v825, %v826
  %v828 = vrot.slane %v821, 4
  %v829 = vadd.f32 %v821, %v828
  %v830 = vrot.slane %v829, 2
  %v831 = vadd.f32 %v829, %v830
  %v832 = vrot.slane %v831, 1
  %v833 = vadd.f32 %v831, %v832
  %v836 = vsel %vm138, %v833, %v827
  %v838 = vadd.f32 %v209, %v836
  %v839 = vxor.u32 %v838, 2147483648
  %v840 = vmul.f32 %v839, 1.442695
  %v841 = vpow.pop %v840
  %v842 = vadd.f32 %v841, 1.0
  %v843 = vrcp.pop %v842
  %v844 = vmul.f32 1.0, %v843
  %v845 = vtanh.pop %v838
  %v846 = vmul.f32 %v844, %v474
  %848 = vrot.lane.b32.xlu0 %v845, 32
  %v849 = vpop.permute.xlu0 %848
  %v851 = vmul.f32 %v844, %v849
  %853 = vrot.lane.b32.xlu0 %v851, 32
  %v854 = vpop.permute.xlu0 %853
  %v856 = vadd.f32 %v846, %v854
  %v857 = vtanh.pop %v856
  %859 = vrot.lane.b32.xlu0 %v857, 32
  %v860 = vpop.permute.xlu0 %859
  %v862 = vmul.f32 %v844, %v860
  %864 = vrot.lane.b32.xlu0 %v862, 64
  %v865 = vpop.permute.xlu0 %864
  %v866 = vsel %vm66, %v865, 0
  %868 = vmatprep.subr.mxu0 0.0
  %869 = vmatpush1.msra.mxu0 %v489
  %870 = vmatprep.subr.mxu0 0.0
  %871 = vmatpush1.msra.mxu0 %v491
  %872 = vmatprep.subr.mxu0 0.0
  %873 = vmatpush1.msra.mxu0 %v493
  %874 = vmatprep.subr.mxu0 0.0
  %875 = vmatpush1.msra.mxu0 %v495
  %876 = vmatprep.subr.mxu0 0.0
  %877 = vmatpush1.msra.mxu0 0.0
  %878 = vmatprep.subr.mxu0 0.0
  %879 = vmatpush1.msra.mxu0 0.0
  %880 = vmatprep.subr.mxu0 0.0
  %881 = vmatpush1.msra.mxu0 0.0
  %882 = vmatprep.subr.mxu0 0.0
  %883 = vmatpush1.msra.mxu0 0.0
  %884 = vmatprep.subr.mxu0 0.0
  %885 = vmatpush1.msra.mxu0 0.0
  %886 = vmatprep.subr.mxu0 0.0
  %887 = vmatpush1.msra.mxu0 0.0
  %888 = vmatprep.subr.mxu0 0.0
  %889 = vmatpush1.msra.mxu0 0.0
  %890 = vmatprep.subr.mxu0 0.0
  %891 = vmatpush1.msra.mxu0 0.0
  %892 = vmatprep.subr.mxu0 0.0
  %893 = vmatpush1.msra.mxu0 0.0
  %894 = vmatprep.subr.mxu0 0.0
  %895 = vmatpush1.msra.mxu0 0.0
  %896 = vmatprep.subr.mxu0 0.0
  %897 = vmatpush1.msra.mxu0 0.0
  %898 = vmatprep.subr.mxu0 0.0
  %899 = vmatpush1.msra.mxu0 0.0
  %900 = vmatprep.subr.mxu0 0.0
  %901 = vmatpush1.msra.mxu0 0.0
  %902 = vmatprep.subr.mxu0 0.0
  %903 = vmatpush1.msra.mxu0 0.0
  %904 = vmatprep.subr.mxu0 0.0
  %905 = vmatpush1.msra.mxu0 0.0
  %906 = vmatprep.subr.mxu0 0.0
  %907 = vmatpush1.msra.mxu0 0.0
  %908 = vmatprep.subr.mxu0 0.0
  %909 = vmatpush1.msra.mxu0 0.0
  %910 = vmatprep.subr.mxu0 0.0
  %911 = vmatpush1.msra.mxu0 0.0
  %912 = vmatprep.subr.mxu0 0.0
  %913 = vmatpush1.msra.mxu0 0.0
  %914 = vmatprep.subr.mxu0 0.0
  %915 = vmatpush1.msra.mxu0 0.0
  %916 = vmatprep.subr.mxu0 0.0
  %917 = vmatpush1.msra.mxu0 0.0
  %918 = vmatprep.subr.mxu0 0.0
  %919 = vmatpush1.msra.mxu0 0.0
  %920 = vmatprep.subr.mxu0 0.0
  %921 = vmatpush1.msra.mxu0 0.0
  %922 = vmatprep.subr.mxu0 0.0
  %923 = vmatpush1.msra.mxu0 0.0
  %924 = vmatprep.subr.mxu0 0.0
  %925 = vmatpush1.msra.mxu0 0.0
  %926 = vmatprep.subr.mxu0 0.0
  %927 = vmatpush1.msra.mxu0 0.0
  %928 = vmatprep.subr.mxu0 0.0
  %929 = vmatpush1.msra.mxu0 0.0
  %930 = vmatprep.subr.mxu0 0.0
  %931 = vmatpush1.msra.mxu0 0.0
  %932 = vmatprep.mubr.f32.mxu0 0.0
  %933 = vmatmul.mubr.f32.gmra.mrb[0].mxu0 %v866
  %v934 = vpop.f32.mrb[0].mxu0
  %v935 = vadd.f32 0.0, %v934
  %v936 = vpop.f32.mrb[0].mxu0
  %937 = vdwg.mxu0
  %v940 = vunpack.c.l.s4 1966171168
  %v941 = vunpack.c.0.s8 %v940
  %v942 = vlaneseq
  %v943 = vshrl.u32 %v942, 7
  %v944 = vsub.s32 %v941, %v943
  %v945 = vrot.slane %v935, %v944
  %v946 = vcombine.high %v945, %v945
  %v948 = vunpack.c.l.s4 1966171168
  %v949 = vunpack.c.0.s8 %v948
  %v950 = vlaneseq
  %v951 = vshrl.u32 %v950, 7
  %v952 = vsub.s32 %v949, %v951
  %v953 = vrot.slane %v945, %v952
  %v955 = vunpack.c.l.s4 1966171168
  %v956 = vunpack.c.0.s8 %v955
  %v957 = vlaneseq
  %v958 = vshrl.u32 %v957, 7
  %v959 = vsub.s32 %v956, %v958
  %v960 = vrot.slane %v946, %v959
  %v961 = vlaneseq
  %v962 = vshrl.u32 %v961, 7
  %v963 = vsub.s32 0, %v962
  %v964 = vrot.slane %v953, %v963
  %v965 = vlaneseq
  %v966 = vshrl.u32 %v965, 7
  %v967 = vsub.s32 0, %v966
  %v968 = vrot.slane %v960, %v967
  %v971 = vadd.f32 %v285, %v964
  %v972 = vadd.f32 %v290, %v968
  %v973 = vtanh.pop %v971
  %v974 = vtanh.pop %v972
  %v975 = vmul.f32 %v973, %v33
  %v976 = vmul.f32 %v974, %v33
  %v977 = vsel %vm66, %v975, 0.0
  %978 = vadd.xlane.f32.xlu0 %v977
  %v979 = vpop.xlane.xlu0 %978
  %v980 = vsel %vm66, %v976, 0.0
  %981 = vadd.xlane.f32.xlu0 %v980
  %v982 = vpop.xlane.xlu0 %981
  %v983 = vadd.f32 %v979, 1e-07
  %v984 = vadd.f32 %v982, 1e-07
  %v987 = vlaneseq
  %v988 = vshrl.u32 %v987, 7
  %v989 = vsub.s32 %v444, %v988
  %v990 = vrot.slane %v983, %v989
  %v991 = vlaneseq
  %v992 = vshrl.u32 %v991, 7
  %v993 = vsub.s32 %v444, %v992
  %v994 = vrot.slane %v984, %v993
  %v995 = vsel %vm138, %v994, %v990
  %v997 = vsel %vm631, %v995, -inf
  %998 = vmax.xlane.f32.xlu0 %v997
  %v999 = vpop.xlane.xlu0 %998
  %v1001 = vlaneseq
  %v1002 = vshrl.u32 %v1001, 7
  %v1003 = vsub.s32 0, %v1002
  %v1004 = vrot.slane %v999, %v1003
  %v1005 = vlaneseq
  %v1006 = vshrl.u32 %v1005, 7
  %v1007 = vsub.s32 1, %v1006
  %v1008 = vrot.slane %v999, %v1007
  %v1011 = vsub.f32 %v983, %v1004
  %v1012 = vsub.f32 %v984, %v1008
  %v1013 = vmul.f32 %v1011, 1.442695
  %v1014 = vpow.pop %v1013
  %v1015 = vmul.f32 %v1012, 1.442695
  %v1016 = vpow.pop %v1015
  %1019 = vset.pattern.permute.xlu0 0
  %1020 = vperm.xlu0 %1019, %v1014
  %v1021 = vpop.permute.xlu0 %1020
  %1022 = vset.pattern.permute.xlu0 0
  %1023 = vperm.xlu0 %1022, %v1016
  %v1024 = vpop.permute.xlu0 %1023
  %v1025 = vlaneseq
  %v1026 = vshrl.u32 %v1025, 7
  %v1027 = vsub.s32 %v444, %v1026
  %v1028 = vrot.slane %v1021, %v1027
  %v1029 = vlaneseq
  %v1030 = vshrl.u32 %v1029, 7
  %v1031 = vsub.s32 %v444, %v1030
  %v1032 = vrot.slane %v1024, %v1031
  %v1033 = vsel %vm138, %v1032, %v1028
  %v1035 = vsel %vm631, %v1033, 0.0
  %1036 = vadd.xlane.f32.xlu0 %v1035
  %v1037 = vpop.xlane.xlu0 %1036
  %v1038 = vlog2.pop %v1037
  %v1039 = vmul.f32 %v1038, 0.6931472
  %1042 = vset.pattern.permute.xlu0 0
  %1043 = vperm.xlu0 %1042, %v1011
  %v1044 = vpop.permute.xlu0 %1043
  %1045 = vset.pattern.permute.xlu0 0
  %1046 = vperm.xlu0 %1045, %v1012
  %v1047 = vpop.permute.xlu0 %1046
  %v1048 = vlaneseq
  %v1049 = vshrl.u32 %v1048, 7
  %v1050 = vsub.s32 %v444, %v1049
  %v1051 = vrot.slane %v1044, %v1050
  %v1052 = vlaneseq
  %v1053 = vshrl.u32 %v1052, 7
  %v1054 = vsub.s32 %v444, %v1053
  %v1055 = vrot.slane %v1047, %v1054
  %v1056 = vsel %vm138, %v1055, %v1051
  %v1058 = vsub.f32 %v1039, %v1056
  %vm1059 = vcmp.gt.f32.partialorder %v809, 0.5
  %v1060 = vsel %vm1059, 7.0, %v1058
  %v1063 = vunpack.c.l.s4 1966171168
  %v1064 = vunpack.c.0.s8 %v1063
  %v1065 = vlaneseq
  %v1066 = vshrl.u32 %v1065, 7
  %v1067 = vsub.s32 %v1064, %v1066
  %v1068 = vrot.slane %v1060, %v1067
  %v1069 = vcombine.high %v1068, %v1068
  %v1071 = vunpack.c.l.s4 1966171168
  %v1072 = vunpack.c.0.s8 %v1071
  %v1073 = vlaneseq
  %v1074 = vshrl.u32 %v1073, 7
  %v1075 = vsub.s32 %v1072, %v1074
  %v1076 = vrot.slane %v1068, %v1075
  %v1078 = vunpack.c.l.s4 1966171168
  %v1079 = vunpack.c.0.s8 %v1078
  %v1080 = vlaneseq
  %v1081 = vshrl.u32 %v1080, 7
  %v1082 = vsub.s32 %v1079, %v1081
  %v1083 = vrot.slane %v1069, %v1082
  %v1084 = vlaneseq
  %v1085 = vshrl.u32 %v1084, 7
  %v1086 = vsub.s32 0, %v1085
  %v1087 = vrot.slane %v1076, %v1086
  %v1088 = vlaneseq
  %v1089 = vshrl.u32 %v1088, 7
  %v1090 = vsub.s32 0, %v1089
  %v1091 = vrot.slane %v1083, %v1090
  %v1094 = vsel %vm449, %v1087, 1e+30
  %v1095 = vsel %vm449, %v1091, 1e+30
  %v1096 = vsel %vm729, %v1094, inf
  %1097 = vmin.xlane.f32.xlu0 %v1096
  %v1098 = vpop.xlane.xlu0 %1097
  %v1099 = vsel %vm729, %v1095, inf
  %1100 = vmin.xlane.f32.xlu0 %v1099
  %v1101 = vpop.xlane.xlu0 %1100
  %vm1102 = vcmp.eq.f32.partialorder %v1094, %v1098
  %vm1103 = vcmp.eq.f32.partialorder %v1095, %v1101
  %v1104 = vsel %vm1102, %v445, 8.0
  %v1105 = vsel %vm1103, %v445, 8.0
  %v1106 = vsel %vm729, %v1104, inf
  %1107 = vmin.xlane.f32.xlu0 %v1106
  %v1108 = vpop.xlane.xlu0 %1107
  %v1109 = vsel %vm729, %v1105, inf
  %1110 = vmin.xlane.f32.xlu0 %v1109
  %v1111 = vpop.xlane.xlu0 %1110
  %vm1112 = vcmp.lt.f32.partialorder %v804, 8.0
  %vm1113 = vcmp.eq.f32.partialorder %v445, %v804
  %v1115 = vlaneseq
  %v1116 = vshrl.u32 %v1115, 7
  %v1117 = vsub.s32 %v444, %v1116
  %v1118 = vrot.slane %v1108, %v1117
  %v1120 = vsel %vm1113, %v1118, 0.0
  %v1121 = vsel %vm755, %v1120, 0.0
  %1122 = vadd.xlane.f32.xlu0 %v1121
  %v1123 = vpop.xlane.xlu0 %1122
  %vm1124 = vcmp.lt.f32.partialorder %v445, %v1123
  %v1125 = vsel %vm1124, 1.0, 0.0
  %v1126 = vsel %vm1112, 1, 0
  %vm1127 = vcmp.eq.s32.totalorder %v1126, 1
  %v1128 = vsel %vm1127, %v1125, 1.0
  %v1129 = vlaneseq
  %v1130 = vshrl.u32 %v1129, 7
  %v1131 = vsub.s32 0, %v1130
  %v1132 = vrot.slane %v1123, %v1131
  %vm1133 = vcmp.ge.f32.partialorder %v448, %v1132
  %v1134 = vsel %vm1133, 1.0, 0.0
  %v1135 = vlaneseq
  %v1136 = vshrl.u32 %v1135, 7
  %v1137 = vsub.s32 0, %v1136
  %v1138 = vrot.slane %v1126, %v1137
  %vm1139 = vcmp.eq.s32.totalorder %v1138, 1
  %v1140 = vsel %vm1139, %v1134, 0.0
  %v1141 = vsub.f32 %v1123, %v804
  %v1142 = vadd.f32 %v1141, 1.0
  %v1143 = vsel %vm1112, %v1142, %v804
  %vm1144 = vcmp.lt.f32.partialorder %v1143, 8.0
  %vm1145 = vcmp.eq.f32.partialorder %v445, %v1143
  %v1147 = vlaneseq
  %v1148 = vshrl.u32 %v1147, 7
  %v1149 = vsub.s32 %v444, %v1148
  %v1150 = vrot.slane %v1111, %v1149
  %v1152 = vsel %vm1145, %v1150, 0.0
  %v1153 = vsel %vm755, %v1152, 0.0
  %1154 = vadd.xlane.f32.xlu0 %v1153
  %v1155 = vpop.xlane.xlu0 %1154
  %vm1156 = vcmp.lt.f32.partialorder %v445, %v1155
  %v1157 = vsel %vm1156, 1.0, 0.0
  %v1158 = vsel %vm1144, 1, 0
  %vm1159 = vcmp.eq.s32.totalorder %v1158, 1
  %v1160 = vsel %vm1159, %v1157, 1.0
  %v1161 = vlaneseq
  %v1162 = vshrl.u32 %v1161, 7
  %v1163 = vsub.s32 0, %v1162
  %v1164 = vrot.slane %v1155, %v1163
  %vm1165 = vcmp.ge.f32.partialorder %v448, %v1164
  %v1166 = vsel %vm1165, 1.0, 0.0
  %v1167 = vlaneseq
  %v1168 = vshrl.u32 %v1167, 7
  %v1169 = vsub.s32 0, %v1168
  %v1170 = vrot.slane %v1158, %v1169
  %vm1171 = vcmp.eq.s32.totalorder %v1170, 1
  %v1172 = vsel %vm1171, %v1166, 0.0
  %v1173 = vsub.f32 %v1155, %v1143
  %v1174 = vadd.f32 %v1173, 1.0
  %v1175 = vsel %vm1144, %v1174, %v1143
  %v1177 = vrot.slane %v1160, 7
  %v1179 = vsel %vm808, %v1128, %v1177
  %1181 = vset.pattern.permute.xlu0 0
  %1182 = vperm.xlu0 %1181, %v1140
  %v1183 = vpop.permute.xlu0 %1182
  %1186 = vset.pattern.permute.xlu0 0
  %1187 = vperm.xlu0 %1186, %v1172
  %v1188 = vpop.permute.xlu0 %1187
  %v1190 = vmul.f32 %v1183, %v368
  %v1191 = vmul.f32 %v1188, %v369
  %v1192 = vrot.slane %v1190, 4
  %v1193 = vadd.f32 %v1190, %v1192
  %v1194 = vrot.slane %v1193, 2
  %v1195 = vadd.f32 %v1193, %v1194
  %v1196 = vrot.slane %v1195, 1
  %v1197 = vadd.f32 %v1195, %v1196
  %v1198 = vrot.slane %v1191, 4
  %v1199 = vadd.f32 %v1191, %v1198
  %v1200 = vrot.slane %v1199, 2
  %v1201 = vadd.f32 %v1199, %v1200
  %v1202 = vrot.slane %v1201, 1
  %v1203 = vadd.f32 %v1201, %v1202
  %v1206 = vsel %vm138, %v1203, %v1197
  %v1208 = vadd.f32 %v209, %v1206
  %v1209 = vxor.u32 %v1208, 2147483648
  %v1210 = vmul.f32 %v1209, 1.442695
  %v1211 = vpow.pop %v1210
  %v1212 = vadd.f32 %v1211, 1.0
  %v1213 = vrcp.pop %v1212
  %v1214 = vmul.f32 1.0, %v1213
  %v1215 = vtanh.pop %v1208
  %v1216 = vmul.f32 %v1214, %v856
  %1218 = vrot.lane.b32.xlu0 %v1215, 32
  %v1219 = vpop.permute.xlu0 %1218
  %v1221 = vmul.f32 %v1214, %v1219
  %1223 = vrot.lane.b32.xlu0 %v1221, 32
  %v1224 = vpop.permute.xlu0 %1223
  %v1226 = vadd.f32 %v1216, %v1224
  %v1227 = vtanh.pop %v1226
  %1229 = vrot.lane.b32.xlu0 %v1227, 32
  %v1230 = vpop.permute.xlu0 %1229
  %v1232 = vmul.f32 %v1214, %v1230
  %1234 = vrot.lane.b32.xlu0 %v1232, 64
  %v1235 = vpop.permute.xlu0 %1234
  %v1236 = vsel %vm66, %v1235, 0
  %1238 = vmatprep.subr.mxu0 0.0
  %1239 = vmatpush1.msra.mxu0 %v489
  %1240 = vmatprep.subr.mxu0 0.0
  %1241 = vmatpush1.msra.mxu0 %v491
  %1242 = vmatprep.subr.mxu0 0.0
  %1243 = vmatpush1.msra.mxu0 %v493
  %1244 = vmatprep.subr.mxu0 0.0
  %1245 = vmatpush1.msra.mxu0 %v495
  %1246 = vmatprep.subr.mxu0 0.0
  %1247 = vmatpush1.msra.mxu0 0.0
  %1248 = vmatprep.subr.mxu0 0.0
  %1249 = vmatpush1.msra.mxu0 0.0
  %1250 = vmatprep.subr.mxu0 0.0
  %1251 = vmatpush1.msra.mxu0 0.0
  %1252 = vmatprep.subr.mxu0 0.0
  %1253 = vmatpush1.msra.mxu0 0.0
  %1254 = vmatprep.subr.mxu0 0.0
  %1255 = vmatpush1.msra.mxu0 0.0
  %1256 = vmatprep.subr.mxu0 0.0
  %1257 = vmatpush1.msra.mxu0 0.0
  %1258 = vmatprep.subr.mxu0 0.0
  %1259 = vmatpush1.msra.mxu0 0.0
  %1260 = vmatprep.subr.mxu0 0.0
  %1261 = vmatpush1.msra.mxu0 0.0
  %1262 = vmatprep.subr.mxu0 0.0
  %1263 = vmatpush1.msra.mxu0 0.0
  %1264 = vmatprep.subr.mxu0 0.0
  %1265 = vmatpush1.msra.mxu0 0.0
  %1266 = vmatprep.subr.mxu0 0.0
  %1267 = vmatpush1.msra.mxu0 0.0
  %1268 = vmatprep.subr.mxu0 0.0
  %1269 = vmatpush1.msra.mxu0 0.0
  %1270 = vmatprep.subr.mxu0 0.0
  %1271 = vmatpush1.msra.mxu0 0.0
  %1272 = vmatprep.subr.mxu0 0.0
  %1273 = vmatpush1.msra.mxu0 0.0
  %1274 = vmatprep.subr.mxu0 0.0
  %1275 = vmatpush1.msra.mxu0 0.0
  %1276 = vmatprep.subr.mxu0 0.0
  %1277 = vmatpush1.msra.mxu0 0.0
  %1278 = vmatprep.subr.mxu0 0.0
  %1279 = vmatpush1.msra.mxu0 0.0
  %1280 = vmatprep.subr.mxu0 0.0
  %1281 = vmatpush1.msra.mxu0 0.0
  %1282 = vmatprep.subr.mxu0 0.0
  %1283 = vmatpush1.msra.mxu0 0.0
  %1284 = vmatprep.subr.mxu0 0.0
  %1285 = vmatpush1.msra.mxu0 0.0
  %1286 = vmatprep.subr.mxu0 0.0
  %1287 = vmatpush1.msra.mxu0 0.0
  %1288 = vmatprep.subr.mxu0 0.0
  %1289 = vmatpush1.msra.mxu0 0.0
  %1290 = vmatprep.subr.mxu0 0.0
  %1291 = vmatpush1.msra.mxu0 0.0
  %1292 = vmatprep.subr.mxu0 0.0
  %1293 = vmatpush1.msra.mxu0 0.0
  %1294 = vmatprep.subr.mxu0 0.0
  %1295 = vmatpush1.msra.mxu0 0.0
  %1296 = vmatprep.subr.mxu0 0.0
  %1297 = vmatpush1.msra.mxu0 0.0
  %1298 = vmatprep.subr.mxu0 0.0
  %1299 = vmatpush1.msra.mxu0 0.0
  %1300 = vmatprep.subr.mxu0 0.0
  %1301 = vmatpush1.msra.mxu0 0.0
  %1302 = vmatprep.mubr.f32.mxu0 0.0
  %1303 = vmatmul.mubr.f32.gmra.mrb[0].mxu0 %v1236
  %v1304 = vpop.f32.mrb[0].mxu0
  %v1305 = vadd.f32 0.0, %v1304
  %v1306 = vpop.f32.mrb[0].mxu0
  %1307 = vdwg.mxu0
  %v1310 = vunpack.c.l.s4 1966171168
  %v1311 = vunpack.c.0.s8 %v1310
  %v1312 = vlaneseq
  %v1313 = vshrl.u32 %v1312, 7
  %v1314 = vsub.s32 %v1311, %v1313
  %v1315 = vrot.slane %v1305, %v1314
  %v1316 = vcombine.high %v1315, %v1315
  %v1318 = vunpack.c.l.s4 1966171168
  %v1319 = vunpack.c.0.s8 %v1318
  %v1320 = vlaneseq
  %v1321 = vshrl.u32 %v1320, 7
  %v1322 = vsub.s32 %v1319, %v1321
  %v1323 = vrot.slane %v1315, %v1322
  %v1325 = vunpack.c.l.s4 1966171168
  %v1326 = vunpack.c.0.s8 %v1325
  %v1327 = vlaneseq
  %v1328 = vshrl.u32 %v1327, 7
  %v1329 = vsub.s32 %v1326, %v1328
  %v1330 = vrot.slane %v1316, %v1329
  %v1331 = vlaneseq
  %v1332 = vshrl.u32 %v1331, 7
  %v1333 = vsub.s32 0, %v1332
  %v1334 = vrot.slane %v1323, %v1333
  %v1335 = vlaneseq
  %v1336 = vshrl.u32 %v1335, 7
  %v1337 = vsub.s32 0, %v1336
  %v1338 = vrot.slane %v1330, %v1337
  %v1341 = vadd.f32 %v285, %v1334
  %v1342 = vadd.f32 %v290, %v1338
  %v1343 = vtanh.pop %v1341
  %v1344 = vtanh.pop %v1342
  %v1345 = vmul.f32 %v1343, %v33
  %v1346 = vmul.f32 %v1344, %v33
  %v1347 = vsel %vm66, %v1345, 0.0
  %1348 = vadd.xlane.f32.xlu0 %v1347
  %v1349 = vpop.xlane.xlu0 %1348
  %v1350 = vsel %vm66, %v1346, 0.0
  %1351 = vadd.xlane.f32.xlu0 %v1350
  %v1352 = vpop.xlane.xlu0 %1351
  %v1353 = vadd.f32 %v1349, 1e-07
  %v1354 = vadd.f32 %v1352, 1e-07
  %v1357 = vlaneseq
  %v1358 = vshrl.u32 %v1357, 7
  %v1359 = vsub.s32 %v444, %v1358
  %v1360 = vrot.slane %v1353, %v1359
  %v1361 = vlaneseq
  %v1362 = vshrl.u32 %v1361, 7
  %v1363 = vsub.s32 %v444, %v1362
  %v1364 = vrot.slane %v1354, %v1363
  %v1365 = vsel %vm138, %v1364, %v1360
  %v1367 = vsel %vm631, %v1365, -inf
  %1368 = vmax.xlane.f32.xlu0 %v1367
  %v1369 = vpop.xlane.xlu0 %1368
  %v1371 = vlaneseq
  %v1372 = vshrl.u32 %v1371, 7
  %v1373 = vsub.s32 0, %v1372
  %v1374 = vrot.slane %v1369, %v1373
  %v1375 = vlaneseq
  %v1376 = vshrl.u32 %v1375, 7
  %v1377 = vsub.s32 1, %v1376
  %v1378 = vrot.slane %v1369, %v1377
  %v1381 = vsub.f32 %v1353, %v1374
  %v1382 = vsub.f32 %v1354, %v1378
  %v1383 = vmul.f32 %v1381, 1.442695
  %v1384 = vpow.pop %v1383
  %v1385 = vmul.f32 %v1382, 1.442695
  %v1386 = vpow.pop %v1385
  %1389 = vset.pattern.permute.xlu0 0
  %1390 = vperm.xlu0 %1389, %v1384
  %v1391 = vpop.permute.xlu0 %1390
  %1392 = vset.pattern.permute.xlu0 0
  %1393 = vperm.xlu0 %1392, %v1386
  %v1394 = vpop.permute.xlu0 %1393
  %v1395 = vlaneseq
  %v1396 = vshrl.u32 %v1395, 7
  %v1397 = vsub.s32 %v444, %v1396
  %v1398 = vrot.slane %v1391, %v1397
  %v1399 = vlaneseq
  %v1400 = vshrl.u32 %v1399, 7
  %v1401 = vsub.s32 %v444, %v1400
  %v1402 = vrot.slane %v1394, %v1401
  %v1403 = vsel %vm138, %v1402, %v1398
  %v1405 = vsel %vm631, %v1403, 0.0
  %1406 = vadd.xlane.f32.xlu0 %v1405
  %v1407 = vpop.xlane.xlu0 %1406
  %v1408 = vlog2.pop %v1407
  %v1409 = vmul.f32 %v1408, 0.6931472
  %1412 = vset.pattern.permute.xlu0 0
  %1413 = vperm.xlu0 %1412, %v1381
  %v1414 = vpop.permute.xlu0 %1413
  %1415 = vset.pattern.permute.xlu0 0
  %1416 = vperm.xlu0 %1415, %v1382
  %v1417 = vpop.permute.xlu0 %1416
  %v1418 = vlaneseq
  %v1419 = vshrl.u32 %v1418, 7
  %v1420 = vsub.s32 %v444, %v1419
  %v1421 = vrot.slane %v1414, %v1420
  %v1422 = vlaneseq
  %v1423 = vshrl.u32 %v1422, 7
  %v1424 = vsub.s32 %v444, %v1423
  %v1425 = vrot.slane %v1417, %v1424
  %v1426 = vsel %vm138, %v1425, %v1421
  %v1428 = vsub.f32 %v1409, %v1426
  %vm1429 = vcmp.gt.f32.partialorder %v1179, 0.5
  %v1430 = vsel %vm1429, 7.0, %v1428
  %v1433 = vunpack.c.l.s4 1966171168
  %v1434 = vunpack.c.0.s8 %v1433
  %v1435 = vlaneseq
  %v1436 = vshrl.u32 %v1435, 7
  %v1437 = vsub.s32 %v1434, %v1436
  %v1438 = vrot.slane %v1430, %v1437
  %v1439 = vcombine.high %v1438, %v1438
  %v1441 = vunpack.c.l.s4 1966171168
  %v1442 = vunpack.c.0.s8 %v1441
  %v1443 = vlaneseq
  %v1444 = vshrl.u32 %v1443, 7
  %v1445 = vsub.s32 %v1442, %v1444
  %v1446 = vrot.slane %v1438, %v1445
  %v1448 = vunpack.c.l.s4 1966171168
  %v1449 = vunpack.c.0.s8 %v1448
  %v1450 = vlaneseq
  %v1451 = vshrl.u32 %v1450, 7
  %v1452 = vsub.s32 %v1449, %v1451
  %v1453 = vrot.slane %v1439, %v1452
  %v1454 = vlaneseq
  %v1455 = vshrl.u32 %v1454, 7
  %v1456 = vsub.s32 0, %v1455
  %v1457 = vrot.slane %v1446, %v1456
  %v1458 = vlaneseq
  %v1459 = vshrl.u32 %v1458, 7
  %v1460 = vsub.s32 0, %v1459
  %v1461 = vrot.slane %v1453, %v1460
  %v1464 = vsel %vm449, %v1457, 1e+30
  %v1465 = vsel %vm449, %v1461, 1e+30
  %v1466 = vsel %vm729, %v1464, inf
  %1467 = vmin.xlane.f32.xlu0 %v1466
  %v1468 = vpop.xlane.xlu0 %1467
  %v1469 = vsel %vm729, %v1465, inf
  %1470 = vmin.xlane.f32.xlu0 %v1469
  %v1471 = vpop.xlane.xlu0 %1470
  %vm1472 = vcmp.eq.f32.partialorder %v1464, %v1468
  %vm1473 = vcmp.eq.f32.partialorder %v1465, %v1471
  %v1474 = vsel %vm1472, %v445, 8.0
  %v1475 = vsel %vm1473, %v445, 8.0
  %v1476 = vsel %vm729, %v1474, inf
  %1477 = vmin.xlane.f32.xlu0 %v1476
  %v1478 = vpop.xlane.xlu0 %1477
  %v1479 = vsel %vm729, %v1475, inf
  %1480 = vmin.xlane.f32.xlu0 %v1479
  %v1481 = vpop.xlane.xlu0 %1480
  %vm1482 = vcmp.lt.f32.partialorder %v1175, 8.0
  %vm1483 = vcmp.eq.f32.partialorder %v445, %v1175
  %v1485 = vlaneseq
  %v1486 = vshrl.u32 %v1485, 7
  %v1487 = vsub.s32 %v444, %v1486
  %v1488 = vrot.slane %v1478, %v1487
  %v1490 = vsel %vm1483, %v1488, 0.0
  %v1491 = vsel %vm755, %v1490, 0.0
  %1492 = vadd.xlane.f32.xlu0 %v1491
  %v1493 = vpop.xlane.xlu0 %1492
  %vm1494 = vcmp.lt.f32.partialorder %v445, %v1493
  %v1495 = vsel %vm1494, 1.0, 0.0
  %v1496 = vsel %vm1482, 1, 0
  %vm1497 = vcmp.eq.s32.totalorder %v1496, 1
  %v1498 = vsel %vm1497, %v1495, 1.0
  %v1499 = vlaneseq
  %v1500 = vshrl.u32 %v1499, 7
  %v1501 = vsub.s32 0, %v1500
  %v1502 = vrot.slane %v1493, %v1501
  %vm1503 = vcmp.ge.f32.partialorder %v448, %v1502
  %v1504 = vsel %vm1503, 1.0, 0.0
  %v1505 = vlaneseq
  %v1506 = vshrl.u32 %v1505, 7
  %v1507 = vsub.s32 0, %v1506
  %v1508 = vrot.slane %v1496, %v1507
  %vm1509 = vcmp.eq.s32.totalorder %v1508, 1
  %v1510 = vsel %vm1509, %v1504, 0.0
  %v1511 = vsub.f32 %v1493, %v1175
  %v1512 = vadd.f32 %v1511, 1.0
  %v1513 = vsel %vm1482, %v1512, %v1175
  %vm1514 = vcmp.lt.f32.partialorder %v1513, 8.0
  %vm1515 = vcmp.eq.f32.partialorder %v445, %v1513
  %v1517 = vlaneseq
  %v1518 = vshrl.u32 %v1517, 7
  %v1519 = vsub.s32 %v444, %v1518
  %v1520 = vrot.slane %v1481, %v1519
  %v1522 = vsel %vm1515, %v1520, 0.0
  %v1523 = vsel %vm755, %v1522, 0.0
  %1524 = vadd.xlane.f32.xlu0 %v1523
  %v1525 = vpop.xlane.xlu0 %1524
  %vm1526 = vcmp.lt.f32.partialorder %v445, %v1525
  %v1527 = vsel %vm1526, 1.0, 0.0
  %v1528 = vsel %vm1514, 1, 0
  %vm1529 = vcmp.eq.s32.totalorder %v1528, 1
  %v1530 = vsel %vm1529, %v1527, 1.0
  %v1531 = vlaneseq
  %v1532 = vshrl.u32 %v1531, 7
  %v1533 = vsub.s32 0, %v1532
  %v1534 = vrot.slane %v1525, %v1533
  %vm1535 = vcmp.ge.f32.partialorder %v448, %v1534
  %v1536 = vsel %vm1535, 1.0, 0.0
  %v1537 = vlaneseq
  %v1538 = vshrl.u32 %v1537, 7
  %v1539 = vsub.s32 0, %v1538
  %v1540 = vrot.slane %v1528, %v1539
  %vm1541 = vcmp.eq.s32.totalorder %v1540, 1
  %v1542 = vsel %vm1541, %v1536, 0.0
  %v1544 = vrot.slane %v1530, 7
  %v1546 = vsel %vm808, %v1498, %v1544
  %1548 = vset.pattern.permute.xlu0 0
  %1549 = vperm.xlu0 %1548, %v1510
  %v1550 = vpop.permute.xlu0 %1549
  %1553 = vset.pattern.permute.xlu0 0
  %1554 = vperm.xlu0 %1553, %v1542
  %v1555 = vpop.permute.xlu0 %1554
  %v1557 = vmul.f32 %v1550, %v368
  %v1558 = vmul.f32 %v1555, %v369
  %v1559 = vrot.slane %v1557, 4
  %v1560 = vadd.f32 %v1557, %v1559
  %v1561 = vrot.slane %v1560, 2
  %v1562 = vadd.f32 %v1560, %v1561
  %v1563 = vrot.slane %v1562, 1
  %v1564 = vadd.f32 %v1562, %v1563
  %v1565 = vrot.slane %v1558, 4
  %v1566 = vadd.f32 %v1558, %v1565
  %v1567 = vrot.slane %v1566, 2
  %v1568 = vadd.f32 %v1566, %v1567
  %v1569 = vrot.slane %v1568, 1
  %v1570 = vadd.f32 %v1568, %v1569
  %v1573 = vsel %vm138, %v1570, %v1564
  %v1575 = vadd.f32 %v209, %v1573
  %v1576 = vxor.u32 %v1575, 2147483648
  %v1577 = vmul.f32 %v1576, 1.442695
  %v1578 = vpow.pop %v1577
  %v1579 = vadd.f32 %v1578, 1.0
  %v1580 = vrcp.pop %v1579
  %v1581 = vmul.f32 1.0, %v1580
  %v1582 = vtanh.pop %v1575
  %v1583 = vmul.f32 %v1581, %v1226
  %1585 = vrot.lane.b32.xlu0 %v1582, 32
  %v1586 = vpop.permute.xlu0 %1585
  %v1588 = vmul.f32 %v1581, %v1586
  %1590 = vrot.lane.b32.xlu0 %v1588, 32
  %v1591 = vpop.permute.xlu0 %1590
  %v1593 = vadd.f32 %v1583, %v1591
  %v1594 = vtanh.pop %v1593
  %1596 = vrot.lane.b32.xlu0 %v1594, 32
  %v1597 = vpop.permute.xlu0 %1596
  %v1599 = vmul.f32 %v1581, %v1597
  %1601 = vrot.lane.b32.xlu0 %v1599, 64
  %v1602 = vpop.permute.xlu0 %1601
  %v1603 = vsel %vm66, %v1602, 0
  %1605 = vmatprep.subr.mxu0 0.0
  %1606 = vmatpush1.msra.mxu0 %v489
  %1607 = vmatprep.subr.mxu0 0.0
  %1608 = vmatpush1.msra.mxu0 %v491
  %1609 = vmatprep.subr.mxu0 0.0
  %1610 = vmatpush1.msra.mxu0 %v493
  %1611 = vmatprep.subr.mxu0 0.0
  %1612 = vmatpush1.msra.mxu0 %v495
  %1613 = vmatprep.subr.mxu0 0.0
  %1614 = vmatpush1.msra.mxu0 0.0
  %1615 = vmatprep.subr.mxu0 0.0
  %1616 = vmatpush1.msra.mxu0 0.0
  %1617 = vmatprep.subr.mxu0 0.0
  %1618 = vmatpush1.msra.mxu0 0.0
  %1619 = vmatprep.subr.mxu0 0.0
  %1620 = vmatpush1.msra.mxu0 0.0
  %1621 = vmatprep.subr.mxu0 0.0
  %1622 = vmatpush1.msra.mxu0 0.0
  %1623 = vmatprep.subr.mxu0 0.0
  %1624 = vmatpush1.msra.mxu0 0.0
  %1625 = vmatprep.subr.mxu0 0.0
  %1626 = vmatpush1.msra.mxu0 0.0
  %1627 = vmatprep.subr.mxu0 0.0
  %1628 = vmatpush1.msra.mxu0 0.0
  %1629 = vmatprep.subr.mxu0 0.0
  %1630 = vmatpush1.msra.mxu0 0.0
  %1631 = vmatprep.subr.mxu0 0.0
  %1632 = vmatpush1.msra.mxu0 0.0
  %1633 = vmatprep.subr.mxu0 0.0
  %1634 = vmatpush1.msra.mxu0 0.0
  %1635 = vmatprep.subr.mxu0 0.0
  %1636 = vmatpush1.msra.mxu0 0.0
  %1637 = vmatprep.subr.mxu0 0.0
  %1638 = vmatpush1.msra.mxu0 0.0
  %1639 = vmatprep.subr.mxu0 0.0
  %1640 = vmatpush1.msra.mxu0 0.0
  %1641 = vmatprep.subr.mxu0 0.0
  %1642 = vmatpush1.msra.mxu0 0.0
  %1643 = vmatprep.subr.mxu0 0.0
  %1644 = vmatpush1.msra.mxu0 0.0
  %1645 = vmatprep.subr.mxu0 0.0
  %1646 = vmatpush1.msra.mxu0 0.0
  %1647 = vmatprep.subr.mxu0 0.0
  %1648 = vmatpush1.msra.mxu0 0.0
  %1649 = vmatprep.subr.mxu0 0.0
  %1650 = vmatpush1.msra.mxu0 0.0
  %1651 = vmatprep.subr.mxu0 0.0
  %1652 = vmatpush1.msra.mxu0 0.0
  %1653 = vmatprep.subr.mxu0 0.0
  %1654 = vmatpush1.msra.mxu0 0.0
  %1655 = vmatprep.subr.mxu0 0.0
  %1656 = vmatpush1.msra.mxu0 0.0
  %1657 = vmatprep.subr.mxu0 0.0
  %1658 = vmatpush1.msra.mxu0 0.0
  %1659 = vmatprep.subr.mxu0 0.0
  %1660 = vmatpush1.msra.mxu0 0.0
  %1661 = vmatprep.subr.mxu0 0.0
  %1662 = vmatpush1.msra.mxu0 0.0
  %1663 = vmatprep.subr.mxu0 0.0
  %1664 = vmatpush1.msra.mxu0 0.0
  %1665 = vmatprep.subr.mxu0 0.0
  %1666 = vmatpush1.msra.mxu0 0.0
  %1667 = vmatprep.subr.mxu0 0.0
  %1668 = vmatpush1.msra.mxu0 0.0
  %1669 = vmatprep.mubr.f32.mxu0 0.0
  %1670 = vmatmul.mubr.f32.gmra.mrb[0].mxu0 %v1603
  %v1671 = vpop.f32.mrb[0].mxu0
  %v1672 = vadd.f32 0.0, %v1671
  %v1673 = vpop.f32.mrb[0].mxu0
  %1674 = vdwg.mxu0
  %v1677 = vunpack.c.l.s4 1966171168
  %v1678 = vunpack.c.0.s8 %v1677
  %v1679 = vlaneseq
  %v1680 = vshrl.u32 %v1679, 7
  %v1681 = vsub.s32 %v1678, %v1680
  %v1682 = vrot.slane %v1672, %v1681
  %v1683 = vcombine.high %v1682, %v1682
  %v1685 = vunpack.c.l.s4 1966171168
  %v1686 = vunpack.c.0.s8 %v1685
  %v1687 = vlaneseq
  %v1688 = vshrl.u32 %v1687, 7
  %v1689 = vsub.s32 %v1686, %v1688
  %v1690 = vrot.slane %v1682, %v1689
  %v1692 = vunpack.c.l.s4 1966171168
  %v1693 = vunpack.c.0.s8 %v1692
  %v1694 = vlaneseq
  %v1695 = vshrl.u32 %v1694, 7
  %v1696 = vsub.s32 %v1693, %v1695
  %v1697 = vrot.slane %v1683, %v1696
  %v1698 = vlaneseq
  %v1699 = vshrl.u32 %v1698, 7
  %v1700 = vsub.s32 0, %v1699
  %v1701 = vrot.slane %v1690, %v1700
  %v1702 = vlaneseq
  %v1703 = vshrl.u32 %v1702, 7
  %v1704 = vsub.s32 0, %v1703
  %v1705 = vrot.slane %v1697, %v1704
  %v1708 = vadd.f32 %v285, %v1701
  %v1709 = vadd.f32 %v290, %v1705
  %v1710 = vtanh.pop %v1708
  %v1711 = vtanh.pop %v1709
  %v1712 = vmul.f32 %v1710, %v33
  %v1713 = vmul.f32 %v1711, %v33
  %v1714 = vsel %vm66, %v1712, 0.0
  %1715 = vadd.xlane.f32.xlu0 %v1714
  %v1716 = vpop.xlane.xlu0 %1715
  %v1717 = vsel %vm66, %v1713, 0.0
  %1718 = vadd.xlane.f32.xlu0 %v1717
  %v1719 = vpop.xlane.xlu0 %1718
  %v1720 = vadd.f32 %v1716, 1e-07
  %v1721 = vadd.f32 %v1719, 1e-07
  %v1724 = vlaneseq
  %v1725 = vshrl.u32 %v1724, 7
  %v1726 = vsub.s32 %v444, %v1725
  %v1727 = vrot.slane %v1720, %v1726
  %v1728 = vlaneseq
  %v1729 = vshrl.u32 %v1728, 7
  %v1730 = vsub.s32 %v444, %v1729
  %v1731 = vrot.slane %v1721, %v1730
  %v1732 = vsel %vm138, %v1731, %v1727
  %v1734 = vsel %vm631, %v1732, -inf
  %1735 = vmax.xlane.f32.xlu0 %v1734
  %v1736 = vpop.xlane.xlu0 %1735
  %v1738 = vlaneseq
  %v1739 = vshrl.u32 %v1738, 7
  %v1740 = vsub.s32 0, %v1739
  %v1741 = vrot.slane %v1736, %v1740
  %v1742 = vlaneseq
  %v1743 = vshrl.u32 %v1742, 7
  %v1744 = vsub.s32 1, %v1743
  %v1745 = vrot.slane %v1736, %v1744
  %v1748 = vsub.f32 %v1720, %v1741
  %v1749 = vsub.f32 %v1721, %v1745
  %v1750 = vmul.f32 %v1748, 1.442695
  %v1751 = vpow.pop %v1750
  %v1752 = vmul.f32 %v1749, 1.442695
  %v1753 = vpow.pop %v1752
  %1756 = vset.pattern.permute.xlu0 0
  %1757 = vperm.xlu0 %1756, %v1751
  %v1758 = vpop.permute.xlu0 %1757
  %1759 = vset.pattern.permute.xlu0 0
  %1760 = vperm.xlu0 %1759, %v1753
  %v1761 = vpop.permute.xlu0 %1760
  %v1762 = vlaneseq
  %v1763 = vshrl.u32 %v1762, 7
  %v1764 = vsub.s32 %v444, %v1763
  %v1765 = vrot.slane %v1758, %v1764
  %v1766 = vlaneseq
  %v1767 = vshrl.u32 %v1766, 7
  %v1768 = vsub.s32 %v444, %v1767
  %v1769 = vrot.slane %v1761, %v1768
  %v1770 = vsel %vm138, %v1769, %v1765
  %v1772 = vsel %vm631, %v1770, 0.0
  %1773 = vadd.xlane.f32.xlu0 %v1772
  %v1774 = vpop.xlane.xlu0 %1773
  %v1775 = vlog2.pop %v1774
  %v1776 = vmul.f32 %v1775, 0.6931472
  %1779 = vset.pattern.permute.xlu0 0
  %1780 = vperm.xlu0 %1779, %v1748
  %v1781 = vpop.permute.xlu0 %1780
  %1782 = vset.pattern.permute.xlu0 0
  %1783 = vperm.xlu0 %1782, %v1749
  %v1784 = vpop.permute.xlu0 %1783
  %v1785 = vlaneseq
  %v1786 = vshrl.u32 %v1785, 7
  %v1787 = vsub.s32 %v444, %v1786
  %v1788 = vrot.slane %v1781, %v1787
  %v1789 = vlaneseq
  %v1790 = vshrl.u32 %v1789, 7
  %v1791 = vsub.s32 %v444, %v1790
  %v1792 = vrot.slane %v1784, %v1791
  %v1793 = vsel %vm138, %v1792, %v1788
  %v1795 = vsub.f32 %v1776, %v1793
  %vm1796 = vcmp.gt.f32.partialorder %v1546, 0.5
  %v1797 = vsel %vm1796, 7.0, %v1795
  %1798 = vrot.lane.b32.xlu0 %v1060, 8
  %v1799 = vpop.permute.xlu0 %1798
  %1801 = vrot.lane.b32.xlu0 %v1430, 16
  %v1802 = vpop.permute.xlu0 %1801
  %1805 = vrot.lane.b32.xlu0 %v1797, 24
  %v1806 = vpop.permute.xlu0 %1805
  %v1808 = vsel %vm729, %v693, %v1799
  %vm1809 = vcmask 130048
  %v1810 = vsel %vm1809, %v1808, %v1802
  %vm1811 = vcmask 195584
  %v1812 = vsel %vm1811, %v1810, %v1806
  %1813 = vst.msk [vmem:[%s2] sm:$0x3] %vm39, %v1812
  // Predicated region
  $region10: #{thumbnail_transformer_forward.1} parent=0 // pred_check
    _
  $region11: #{thumbnail_transformer_forward.1} parent=0 // pred_check_branch
    %1815 = sbr.rel (0) target = $region13
  $region12: #{thumbnail_transformer_forward.1} parent=0 // pred_region
    _
  $region13: #{thumbnail_transformer_forward.1} parent=0 // pred_fallthru
    _
  // Predicated region
  $region14: #{thumbnail_transformer_forward.1} parent=0 // pred_check
    _
  $region15: #{thumbnail_transformer_forward.1} parent=0 // pred_check_branch
    %1817 = sbr.rel (0) target = $region17
  $region16: #{thumbnail_transformer_forward.1} parent=0 // pred_region
    _
  $region17: #{thumbnail_transformer_forward.1} parent=0 // pred_fallthru
    _

</llo_original>
